<compile_context>
chip_gen: v5e
topology: v5e:2x2
jax: 0.10.0
libtpu: 0.0.40
codegen_flags: <defaults>
</compile_context>

<pallas_src>
import functools

import jax
import jax.numpy as jnp
from jax import lax
from jax.experimental import pallas as pl
from jax.experimental.pallas import tpu as pltpu

_F32 = 4  # bytes


# --------------------------------------------------------------------------
# Tiling / VMEM sizing helpers (trace-time Python).
# --------------------------------------------------------------------------
def _vmem_physical_bytes():
    """Physical per-core VMEM, with a conservative fallback (v7x: 64 MiB)."""
    try:
        info = pltpu.get_tpu_info()
        cap = getattr(info, "vmem_capacity_bytes", None)
        if cap:
            return int(cap)
    except Exception:
        pass
    return 64 * 1024 * 1024


def _vmem_bytes_for_tile(H, W, Ho, Wo, tile_h, in_itemsize, win):
    """Rough per-grid-step VMEM footprint for a given output-row tile height."""
    hin = min(tile_h + win - 1, H)
    inputs = 2 * 2 * H * W * in_itemsize      # X, Y full-image blocks, double-buffered
    bands = _F32 * (tile_h * hin + W * Wo)    # B_v, B_h band matrices
    planes = _F32 * 3 * hin * W               # x, y f32 casts + one live product plane
    inter = _F32 * 2 * tile_h * W             # B_v @ plane intermediates
    elt = _F32 * 8 * tile_h * Wo              # ux/uy/vx/vy/vxy + elementwise temps
    outs = 2 * _F32 * tile_h * Wo             # output block, double-buffered
    return inputs + bands + planes + inter + elt + outs


def _choose_tiling(H, W, Ho, Wo, in_itemsize, win):
    """Pick the output-row tile height and a size-derived vmem limit."""
    phys = _vmem_physical_bytes()
    budget = int(phys * 0.70)                 # headroom for compiler scratch
    tile_h = Ho                               # single tile when it fits
    if _vmem_bytes_for_tile(H, W, Ho, Wo, Ho, in_itemsize, win) > budget:
        for cand in (512, 384, 256, 192, 128, 96, 64, 48, 32, 24, 16, 8):
            if cand < Ho and _vmem_bytes_for_tile(
                    H, W, Ho, Wo, cand, in_itemsize, win) <= budget:
                tile_h = cand
                break
        else:
            # TODO(synk): manual row-halo DMA of the inputs for truly huge
            # frames; the full-image input block is the remaining footprint.
            tile_h = 8 if Ho > 8 else Ho
    est = _vmem_bytes_for_tile(H, W, Ho, Wo, tile_h, in_itemsize, win)
    limit = int(min(phys * 0.85, max(est * 1.5 + (8 << 20), 48 << 20)))
    limit = max(limit, 32 << 20)
    return tile_h, limit


# --------------------------------------------------------------------------
# Kernel bodies.
# --------------------------------------------------------------------------
def _ssim_tile(x_ref, y_ref, dr, *, win, k1, k2, tile_h, single_tile):
    """SSIM map for one output-row tile of one image pair held in VMEM.

    Returns (S, r0): S is (tile_h, Wo) f32, row a of S is global output row
    r0 + a (rows past Ho are garbage and are masked / dropped by the caller).
    """
    H, W = x_ref.shape
    hin = tile_h + win - 1
    wo = W - win + 1
    np_ = win * win
    inv_np = 1.0 / np_
    cov_norm = np_ / (np_ - 1)

    if single_tile:
        r0 = 0
        d = 0
        x = x_ref[...].astype(jnp.float32)     # cast in-kernel (native dtype in HBM)
        y = y_ref[...].astype(jnp.float32)
    else:
        # Halo read: rows [r0, r0 + tile_h + win - 1), clamped so the static
        # length slice never leaves the image; the clamp offset d is folded
        # into the vertical band matrix below (keeps the last tile correct
        # even when Ho is not a multiple of tile_h).
        r0 = pl.multiple_of(pl.program_id(1) * tile_h, 8)
        r0c = jnp.minimum(r0, H - hin)
        d = r0 - r0c
        x = x_ref[pl.ds(r0c, hin), :].astype(jnp.float32)
        y = y_ref[pl.ds(r0c, hin), :].astype(jnp.float32)

    # Banded 0/1 summation matrices: box(img) = (B_v @ img @ B_h) / win^2.
    ai = lax.broadcasted_iota(jnp.int32, (tile_h, hin), 0)
    bi = lax.broadcasted_iota(jnp.int32, (tile_h, hin), 1)
    bv = ((bi >= ai + d) & (bi < ai + d + win)).astype(jnp.float32)
    li = lax.broadcasted_iota(jnp.int32, (W, wo), 0)
    ki = lax.broadcasted_iota(jnp.int32, (W, wo), 1)
    bh = ((li >= ki) & (li < ki + win)).astype(jnp.float32)

    def box(img):
        # Separable box filter as two MXU matmuls; frees the VPU/XLU for the
        # elementwise SSIM math.  HIGHEST keeps f32-level accuracy (band
        # matrices are exact 0/1), validated against the 1e-5 tolerance.
        t = jnp.dot(bv, img, preferred_element_type=jnp.float32,
                    precision=lax.Precision.HIGHEST)
        u = jnp.dot(t, bh, preferred_element_type=jnp.float32,
                    precision=lax.Precision.HIGHEST)
        return u * inv_np

    ux = box(x)
    uy = box(y)
    # Box the squared / cross planes one at a time so only one extra
    # tile-sized temporary is live at once (lower VMEM / vreg pressure).
    vx = cov_norm * (box(x * x) - ux * ux)
    vy = cov_norm * (box(y * y) - uy * uy)
    vxy = cov_norm * (box(x * y) - ux * uy)

    c1 = (k1 * dr) ** 2
    c2 = (k2 * dr) ** 2
    a1 = 2.0 * ux * uy + c1
    a2 = 2.0 * vxy + c2
    b1 = ux * ux + uy * uy + c1
    b2 = vx + vy + c2
    return (a1 * a2) / (b1 * b2), r0


def _ssim_sum_kernel(dr_ref, x_ref, y_ref, psum_ref, *,
                     win, k1, k2, tile_h, ho, single_tile):
    """reduced=True path: per-(batch, row-tile) column-wise partial sums."""
    dr = dr_ref[pl.program_id(0)]
    s, r0 = _ssim_tile(x_ref, y_ref, dr, win=win, k1=k1, k2=k2,
                       tile_h=tile_h, single_tile=single_tile)
    if not single_tile:
        row = lax.broadcasted_iota(jnp.int32, s.shape, 0) + r0
        s = jnp.where(row < ho, s, 0.0)
    # Sublane-only reduction (no cross-lane reduce / broadcast in-kernel);
    # the tiny final sum happens in the JAX wrapper.
    psum_ref[...] = jnp.sum(s, axis=0, keepdims=True)


def _ssim_map_kernel(dr_ref, x_ref, y_ref, s_ref, *,
                     win, k1, k2, tile_h, single_tile):
    """reduced=False path: write the SSIM map tile for (batch, row-tile)."""
    dr = dr_ref[pl.program_id(0)]
    s, _ = _ssim_tile(x_ref, y_ref, dr, win=win, k1=k1, k2=k2,
                      tile_h=tile_h, single_tile=single_tile)
    s_ref[...] = s.astype(s_ref.dtype)


# --------------------------------------------------------------------------
# Wrapper.
# --------------------------------------------------------------------------
def ssim_loss(X, Y, data_range, reduced=True, *, win_size=7, k1=0.01, k2=0.03):
    """Pallas equivalent of SSIMLoss.forward.

    X, Y       : (N, 1, H, W) arrays (any float dtype; kept native in HBM).
    data_range : scalar or per-sample (N,) values.
    """
    N, C, H, W = X.shape
    assert C == 1, "SSIMLoss conv weight (1,1,w,w) requires a single channel"
    assert H >= win_size and W >= win_size, "image smaller than the SSIM window"
    Ho, Wo = H - win_size + 1, W - win_size + 1

    x = X.reshape(N, H, W)                    # free squeeze; no pad, no cast
    y = Y.reshape(N, H, W)

    dr = jnp.asarray(data_range, jnp.float32).reshape(-1)
    if dr.size == 1:
        dr = jnp.broadcast_to(dr, (N,))
    elif dr.size != N:
        raise ValueError("data_range must be a scalar or one value per sample")

    in_itemsize = jnp.dtype(X.dtype).itemsize
    tile_h, vmem_limit = _choose_tiling(H, W, Ho, Wo, in_itemsize, win_size)
    rt = -(-Ho // tile_h)
    single_tile = rt == 1
    hin = min(tile_h + win_size - 1, H)

    grid = (N, rt)
    in_specs = [
        pl.BlockSpec((None, H, W), lambda i, r, dr_s: (i, 0, 0)),
        pl.BlockSpec((None, H, W), lambda i, r, dr_s: (i, 0, 0)),
    ]
    compiler_params = pltpu.CompilerParams(
        dimension_semantics=("parallel", "parallel"),
        vmem_limit_bytes=vmem_limit,
    )
    matmul_flops = 10 * (tile_h * hin * W + tile_h * W * Wo)  # 5 planes x 2 matmuls
    elt_flops = 3 * hin * W + 40 * tile_h * Wo
    flops = int(N * rt * (matmul_flops + elt_flops))
    read_bytes = 2 * N * H * W * in_itemsize

    if reduced:
        kernel = functools.partial(
            _ssim_sum_kernel, win=win_size, k1=k1, k2=k2,
            tile_h=tile_h, ho=Ho, single_tile=single_tile)
        psums = pl.pallas_call(
            kernel,
            out_shape=jax.ShapeDtypeStruct((N, rt, 1, Wo), jnp.float32),
            grid_spec=pltpu.PrefetchScalarGridSpec(
                num_scalar_prefetch=1,
                grid=grid,
                in_specs=in_specs,
                out_specs=pl.BlockSpec((None, None, 1, Wo),
                                       lambda i, r, dr_s: (i, r, 0, 0)),
            ),
            compiler_params=compiler_params,
            cost_estimate=pl.CostEstimate(
                flops=flops, transcendentals=0,
                bytes_accessed=int(read_bytes + N * rt * Wo * _F32)),
        )(dr, x, y)
        total = jnp.sum(psums)
        return 1.0 - total / (N * C * Ho * Wo)
    else:
        kernel = functools.partial(
            _ssim_map_kernel, win=win_size, k1=k1, k2=k2,
            tile_h=tile_h, single_tile=single_tile)
        s_map = pl.pallas_call(
            kernel,
            out_shape=jax.ShapeDtypeStruct((N, Ho, Wo), jnp.float32),
            grid_spec=pltpu.PrefetchScalarGridSpec(
                num_scalar_prefetch=1,
                grid=grid,
                in_specs=in_specs,
                out_specs=pl.BlockSpec((None, tile_h, Wo),
                                       lambda i, r, dr_s: (i, r, 0)),
            ),
            compiler_params=compiler_params,
            cost_estimate=pl.CostEstimate(
                flops=flops, transcendentals=0,
                bytes_accessed=int(read_bytes + N * Ho * Wo * _F32)),
        )(dr, x, y)
        # Re-insert the unit channel dim; no width slice / extra HBM copy.
        return (1.0 - s_map).reshape(N, C, Ho, Wo)


# --------------------------------------------------------------------------
# Pure-JAX reference (mirrors the PyTorch module with lax convs).
# --------------------------------------------------------------------------
def _ssim_loss_ref(X, Y, data_range, reduced=True, win_size=7, k1=0.01, k2=0.03):
    Xf = X.astype(jnp.float32)
    Yf = Y.astype(jnp.float32)
    dr = jnp.asarray(data_range, jnp.float32)
    if dr.size > 1:
        dr = dr.reshape(-1, 1, 1, 1)
    w = jnp.ones((1, 1, win_size, win_size), jnp.float32) / (win_size ** 2)
    NP = win_size ** 2
    cov_norm = NP / (NP - 1)
    dn = lax.conv_dimension_numbers(Xf.shape, w.shape, ("NCHW", "OIHW", "NCHW"))
    conv = lambda a: lax.conv_general_dilated(
        a, w, (1, 1), "VALID", dimension_numbers=dn,
        precision=lax.Precision.HIGHEST)
    C1 = (k1 * dr) ** 2
    C2 = (k2 * dr) ** 2
    ux, uy = conv(Xf), conv(Yf)
    uxx, uyy, uxy = conv(Xf * Xf), conv(Yf * Yf), conv(Xf * Yf)
    vx = cov_norm * (uxx - ux * ux)
    vy = cov_norm * (uyy - uy * uy)
    vxy = cov_norm * (uxy - ux * uy)
    A1, A2 = 2 * ux * uy + C1, 2 * vxy + C2
    B1, B2 = ux ** 2 + uy ** 2 + C1, vx + vy + C2
    S = A1 * A2 / (B1 * B2)
    return 1 - S.mean() if reduced else 1 - S


if __name__ == "__main__":
    key = jax.random.PRNGKey(0)
    kx, ky = jax.random.split(key)
    N, C, H, W = 2, 1, 16, 16
    X = jax.random.uniform(kx, (N, C, H, W), jnp.float32)
    Y = jax.random.uniform(ky, (N, C, H, W), jnp.float32)
    data_range = jnp.float32(1.0)

    # Scalar data_range, reduced loss.
    out = jax.block_until_ready(ssim_loss(X, Y, data_range, reduced=True))
    ref = _ssim_loss_ref(X, Y, data_range, reduced=True)
    assert out.shape == (), out.shape
    assert jnp.allclose(out, ref, atol=1e-5, rtol=1e-5), (out, ref)

    # Scalar data_range, full SSIM map.
    out_map = jax.block_until_ready(ssim_loss(X, Y, data_range, reduced=False))
    ref_map = _ssim_loss_ref(X, Y, data_range, reduced=False)
    assert out_map.shape == (N, C, H - 6, W - 6), out_map.shape
    assert jnp.allclose(out_map, ref_map, atol=1e-5, rtol=1e-5)

    # Per-sample data_range + bf16 inputs (exercises the in-kernel cast).
    dr_vec = jnp.array([1.0, 0.75], jnp.float32)
    Xb = X.astype(jnp.bfloat16)
    Yb = Y.astype(jnp.bfloat16)
    out2 = jax.block_until_ready(ssim_loss(Xb, Yb, dr_vec, reduced=True))
    ref2 = _ssim_loss_ref(Xb, Yb, dr_vec, reduced=True)
    assert jnp.allclose(out2, ref2, atol=1e-5, rtol=1e-5), (out2, ref2)

    print("KERNEL_OK")
</pallas_src>

<mosaic_0001>
module attributes {stable_mosaic.version = 11 : i64} {
  func.func @_ssim_sum_kernel(%arg0: i32, %arg1: i32, %arg2: memref<2xf32, #tpu.memory_space<smem>>, %arg3: memref<1x16x16xf32, #tpu.memory_space<vmem>>, %arg4: memref<1x16x16xf32, #tpu.memory_space<vmem>>, %arg5: memref<1x1x1x10xf32, #tpu.memory_space<vmem>>) attributes {dimension_semantics = [#tpu.dimension_semantics<parallel>, #tpu.dimension_semantics<parallel>], iteration_bounds = array<i64: 2, 1>, scalar_prefetch = 1 : i64, scratch_operands = 0 : i64, tpu.core_type = #tpu.core_type<tc>, window_params = [{transform_indices = @transform_0, window_bounds = array<i64: 1, 16, 16>}, {transform_indices = @transform_1, window_bounds = array<i64: 1, 16, 16>}, {transform_indices = @transform_2, window_bounds = array<i64: 1, 1, 1, 10>}]} {
    %0 = arith.index_cast %arg0 : i32 to index
    %1 = memref.load %arg2[%0] : memref<2xf32, #tpu.memory_space<smem>>
    %c0 = arith.constant 0 : index
    %c0_0 = arith.constant 0 : index
    %c0_1 = arith.constant 0 : index
    %2 = vector.load %arg3[%c0, %c0_0, %c0_1] : memref<1x16x16xf32, #tpu.memory_space<vmem>>, vector<1x16x16xf32>
    %3 = vector.shape_cast %2 : vector<1x16x16xf32> to vector<16x16xf32>
    %c0_2 = arith.constant 0 : index
    %c0_3 = arith.constant 0 : index
    %c0_4 = arith.constant 0 : index
    %4 = vector.load %arg4[%c0_2, %c0_3, %c0_4] : memref<1x16x16xf32, #tpu.memory_space<vmem>>, vector<1x16x16xf32>
    %5 = vector.shape_cast %4 : vector<1x16x16xf32> to vector<16x16xf32>
    %6 = tpu.iota {dimensions = array<i32: 0>} : vector<10x16xi32>
    %7 = tpu.iota {dimensions = array<i32: 1>} : vector<10x16xi32>
    %c0_i32 = arith.constant 0 : i32
    %8 = vector.broadcast %c0_i32 : i32 to vector<10x16xi32>
    %9 = arith.addi %6, %8 : vector<10x16xi32>
    %10 = arith.cmpi sge, %7, %9 : vector<10x16xi32>
    %c0_i32_5 = arith.constant 0 : i32
    %11 = vector.broadcast %c0_i32_5 : i32 to vector<10x16xi32>
    %12 = arith.addi %6, %11 : vector<10x16xi32>
    %c7_i32 = arith.constant 7 : i32
    %13 = vector.broadcast %c7_i32 : i32 to vector<10x16xi32>
    %14 = arith.addi %12, %13 : vector<10x16xi32>
    %15 = arith.cmpi slt, %7, %14 : vector<10x16xi32>
    %16 = arith.andi %10, %15 : vector<10x16xi1>
    %17 = arith.extui %16 : vector<10x16xi1> to vector<10x16xi32>
    %18 = arith.sitofp %17 : vector<10x16xi32> to vector<10x16xf32>
    %19 = tpu.iota {dimensions = array<i32: 0>} : vector<16x10xi32>
    %20 = tpu.iota {dimensions = array<i32: 1>} : vector<16x10xi32>
    %21 = arith.cmpi sge, %19, %20 : vector<16x10xi32>
    %c7_i32_6 = arith.constant 7 : i32
    %22 = vector.broadcast %c7_i32_6 : i32 to vector<16x10xi32>
    %23 = arith.addi %20, %22 : vector<16x10xi32>
    %24 = arith.cmpi slt, %19, %23 : vector<16x10xi32>
    %25 = arith.andi %21, %24 : vector<16x10xi1>
    %26 = arith.extui %25 : vector<16x10xi1> to vector<16x10xi32>
    %27 = arith.sitofp %26 : vector<16x10xi32> to vector<16x10xf32>
    %cst = arith.constant dense<0.000000e+00> : vector<10x16xf32>
    %28 = tpu.matmul %18, %3, %cst {dimension_numbers = #tpu.dot_dimension_numbers<[1], [0], [0], [1], [0, 0, 1, 1], [], []>, precision = #tpu.contract_precision<fp32>} : vector<10x16xf32>, vector<16x16xf32>, vector<10x16xf32> -> vector<10x16xf32>
    %cst_7 = arith.constant dense<0.000000e+00> : vector<10x10xf32>
    %29 = tpu.matmul %28, %27, %cst_7 {dimension_numbers = #tpu.dot_dimension_numbers<[1], [0], [0], [1], [0, 0, 1, 1], [], []>, precision = #tpu.contract_precision<fp32>} : vector<10x16xf32>, vector<16x10xf32>, vector<10x10xf32> -> vector<10x10xf32>
    %cst_8 = arith.constant 0.0204081628 : f32
    %30 = vector.broadcast %cst_8 : f32 to vector<10x10xf32>
    %31 = arith.mulf %29, %30 : vector<10x10xf32>
    %cst_9 = arith.constant dense<0.000000e+00> : vector<10x16xf32>
    %32 = tpu.matmul %18, %5, %cst_9 {dimension_numbers = #tpu.dot_dimension_numbers<[1], [0], [0], [1], [0, 0, 1, 1], [], []>, precision = #tpu.contract_precision<fp32>} : vector<10x16xf32>, vector<16x16xf32>, vector<10x16xf32> -> vector<10x16xf32>
    %cst_10 = arith.constant dense<0.000000e+00> : vector<10x10xf32>
    %33 = tpu.matmul %32, %27, %cst_10 {dimension_numbers = #tpu.dot_dimension_numbers<[1], [0], [0], [1], [0, 0, 1, 1], [], []>, precision = #tpu.contract_precision<fp32>} : vector<10x16xf32>, vector<16x10xf32>, vector<10x10xf32> -> vector<10x10xf32>
    %cst_11 = arith.constant 0.0204081628 : f32
    %34 = vector.broadcast %cst_11 : f32 to vector<10x10xf32>
    %35 = arith.mulf %33, %34 : vector<10x10xf32>
    %36 = arith.mulf %3, %3 : vector<16x16xf32>
    %cst_12 = arith.constant dense<0.000000e+00> : vector<10x16xf32>
    %37 = tpu.matmul %18, %36, %cst_12 {dimension_numbers = #tpu.dot_dimension_numbers<[1], [0], [0], [1], [0, 0, 1, 1], [], []>, precision = #tpu.contract_precision<fp32>} : vector<10x16xf32>, vector<16x16xf32>, vector<10x16xf32> -> vector<10x16xf32>
    %cst_13 = arith.constant dense<0.000000e+00> : vector<10x10xf32>
    %38 = tpu.matmul %37, %27, %cst_13 {dimension_numbers = #tpu.dot_dimension_numbers<[1], [0], [0], [1], [0, 0, 1, 1], [], []>, precision = #tpu.contract_precision<fp32>} : vector<10x16xf32>, vector<16x10xf32>, vector<10x10xf32> -> vector<10x10xf32>
    %cst_14 = arith.constant 0.0204081628 : f32
    %39 = vector.broadcast %cst_14 : f32 to vector<10x10xf32>
    %40 = arith.mulf %38, %39 : vector<10x10xf32>
    %41 = arith.mulf %31, %31 : vector<10x10xf32>
    %42 = arith.subf %40, %41 : vector<10x10xf32>
    %cst_15 = arith.constant 1.02083337 : f32
    %43 = vector.broadcast %cst_15 : f32 to vector<10x10xf32>
    %44 = arith.mulf %43, %42 : vector<10x10xf32>
    %45 = arith.mulf %5, %5 : vector<16x16xf32>
    %cst_16 = arith.constant dense<0.000000e+00> : vector<10x16xf32>
    %46 = tpu.matmul %18, %45, %cst_16 {dimension_numbers = #tpu.dot_dimension_numbers<[1], [0], [0], [1], [0, 0, 1, 1], [], []>, precision = #tpu.contract_precision<fp32>} : vector<10x16xf32>, vector<16x16xf32>, vector<10x16xf32> -> vector<10x16xf32>
    %cst_17 = arith.constant dense<0.000000e+00> : vector<10x10xf32>
    %47 = tpu.matmul %46, %27, %cst_17 {dimension_numbers = #tpu.dot_dimension_numbers<[1], [0], [0], [1], [0, 0, 1, 1], [], []>, precision = #tpu.contract_precision<fp32>} : vector<10x16xf32>, vector<16x10xf32>, vector<10x10xf32> -> vector<10x10xf32>
    %cst_18 = arith.constant 0.0204081628 : f32
    %48 = vector.broadcast %cst_18 : f32 to vector<10x10xf32>
    %49 = arith.mulf %47, %48 : vector<10x10xf32>
    %50 = arith.mulf %35, %35 : vector<10x10xf32>
    %51 = arith.subf %49, %50 : vector<10x10xf32>
    %cst_19 = arith.constant 1.02083337 : f32
    %52 = vector.broadcast %cst_19 : f32 to vector<10x10xf32>
    %53 = arith.mulf %52, %51 : vector<10x10xf32>
    %54 = arith.mulf %3, %5 : vector<16x16xf32>
    %cst_20 = arith.constant dense<0.000000e+00> : vector<10x16xf32>
    %55 = tpu.matmul %18, %54, %cst_20 {dimension_numbers = #tpu.dot_dimension_numbers<[1], [0], [0], [1], [0, 0, 1, 1], [], []>, precision = #tpu.contract_precision<fp32>} : vector<10x16xf32>, vector<16x16xf32>, vector<10x16xf32> -> vector<10x16xf32>
    %cst_21 = arith.constant dense<0.000000e+00> : vector<10x10xf32>
    %56 = tpu.matmul %55, %27, %cst_21 {dimension_numbers = #tpu.dot_dimension_numbers<[1], [0], [0], [1], [0, 0, 1, 1], [], []>, precision = #tpu.contract_precision<fp32>} : vector<10x16xf32>, vector<16x10xf32>, vector<10x10xf32> -> vector<10x10xf32>
    %cst_22 = arith.constant 0.0204081628 : f32
    %57 = vector.broadcast %cst_22 : f32 to vector<10x10xf32>
    %58 = arith.mulf %56, %57 : vector<10x10xf32>
    %59 = arith.mulf %31, %35 : vector<10x10xf32>
    %60 = arith.subf %58, %59 : vector<10x10xf32>
    %cst_23 = arith.constant 1.02083337 : f32
    %61 = vector.broadcast %cst_23 : f32 to vector<10x10xf32>
    %62 = arith.mulf %61, %60 : vector<10x10xf32>
    %cst_24 = arith.constant 0.00999999977 : f32
    %63 = arith.mulf %cst_24, %1 : f32
    %64 = arith.mulf %63, %63 : f32
    %cst_25 = arith.constant 3.000000e-02 : f32
    %65 = arith.mulf %cst_25, %1 : f32
    %66 = arith.mulf %65, %65 : f32
    %cst_26 = arith.constant 2.000000e+00 : f32
    %67 = vector.broadcast %cst_26 : f32 to vector<10x10xf32>
    %68 = arith.mulf %67, %31 : vector<10x10xf32>
    %69 = arith.mulf %68, %35 : vector<10x10xf32>
    %70 = vector.broadcast %64 : f32 to vector<10x10xf32>
    %71 = arith.addf %69, %70 : vector<10x10xf32>
    %cst_27 = arith.constant 2.000000e+00 : f32
    %72 = vector.broadcast %cst_27 : f32 to vector<10x10xf32>
    %73 = arith.mulf %72, %62 : vector<10x10xf32>
    %74 = vector.broadcast %66 : f32 to vector<10x10xf32>
    %75 = arith.addf %73, %74 : vector<10x10xf32>
    %76 = arith.mulf %31, %31 : vector<10x10xf32>
    %77 = arith.mulf %35, %35 : vector<10x10xf32>
    %78 = arith.addf %76, %77 : vector<10x10xf32>
    %79 = vector.broadcast %64 : f32 to vector<10x10xf32>
    %80 = arith.addf %78, %79 : vector<10x10xf32>
    %81 = arith.addf %44, %53 : vector<10x10xf32>
    %82 = vector.broadcast %66 : f32 to vector<10x10xf32>
    %83 = arith.addf %81, %82 : vector<10x10xf32>
    %84 = arith.mulf %71, %75 : vector<10x10xf32>
    %85 = arith.mulf %80, %83 : vector<10x10xf32>
    %86 = arith.divf %84, %85 : vector<10x10xf32>
    %cst_28 = arith.constant dense<0.000000e+00> : vector<10xf32>
    %87 = vector.multi_reduction <add>, %86, %cst_28 [0] : vector<10x10xf32> to vector<10xf32>
    %88 = vector.shape_cast %87 : vector<10xf32> to vector<1x10xf32>
    %c0_29 = arith.constant 0 : index
    %c0_30 = arith.constant 0 : index
    %c0_31 = arith.constant 0 : index
    %c0_32 = arith.constant 0 : index
    %89 = vector.load %arg5[%c0_29, %c0_30, %c0_31, %c0_32] : memref<1x1x1x10xf32, #tpu.memory_space<vmem>>, vector<1x1x1x10xf32>
    %90 = vector.shape_cast %89 : vector<1x1x1x10xf32> to vector<1x10xf32>
    %91 = vector.shape_cast %88 : vector<1x10xf32> to vector<1x1x1x10xf32>
    tpu.vector_store %arg5[%c0_29, %c0_30, %c0_31, %c0_32], %91 {strides = array<i32>} : memref<1x1x1x10xf32, #tpu.memory_space<vmem>>, vector<1x1x1x10xf32>,
    return
  }
  func.func @transform_0(%arg0: i32, %arg1: i32, %arg2: memref<2xf32, #tpu.memory_space<smem>>) -> (i32, i32, i32) {
    %c0_i32 = arith.constant 0 : i32
    %c0_i32_0 = arith.constant 0 : i32
    %c0_i32_1 = arith.constant 0 : i32
    return %arg0, %c0_i32, %c0_i32_0 : i32, i32, i32
  }
  func.func @transform_1(%arg0: i32, %arg1: i32, %arg2: memref<2xf32, #tpu.memory_space<smem>>) -> (i32, i32, i32) {
    %c0_i32 = arith.constant 0 : i32
    %c0_i32_0 = arith.constant 0 : i32
    %c0_i32_1 = arith.constant 0 : i32
    return %arg0, %c0_i32, %c0_i32_0 : i32, i32, i32
  }
  func.func @transform_2(%arg0: i32, %arg1: i32, %arg2: memref<2xf32, #tpu.memory_space<smem>>) -> (i32, i32, i32, i32) {
    %c0_i32 = arith.constant 0 : i32
    %c0_i32_0 = arith.constant 0 : i32
    %c0_i32_1 = arith.constant 0 : i32
    return %arg0, %arg1, %c0_i32, %c0_i32_0 : i32, i32, i32, i32
  }
}

</mosaic_0001>

<llo_original>
// kernel: tpu_custom_call.1
$region0: #{tpu_custom_call.1}
  #allocation0 [shape = 'u32[]', space=smem, size = 0x4, offset = 0x4, fixed_abs, tag = 'smem constant byte address 0x4 - core index']
  #allocation1 [shape = 'u32[72,128]{1,0:T(1,128)}', space=vmem, size = 0x9000, scoped, tag = 'internal scratch']
  #allocation2 [shape = 's32[1]{0}', space=sflag, size = 0x4, scoped, tag = 'scoped memory for tpu_custom_call.1']
  #allocation3 [shape = 'u8[512]{0}', space=smem, size = 0x200, scoped, tag = 'prefetched SMEM operand 0']
  %s0 = inlined_call_operand.hbm [shape: f32[2], index: 0, kind: input, shape index: {}]
  %s1 = inlined_call_operand.hbm [shape: f32[2,16,16], index: 1, kind: input, shape index: {}]
  %s2 = inlined_call_operand.hbm [shape: f32[2,16,16], index: 2, kind: input, shape index: {}]
  %s3 = inlined_call_operand.hbm [shape: f32[2,1,1,10], index: 3, kind: output, shape index: {}]
  %s4 = sld [smem:[#allocation0]]
  $region49: #{tpu_custom_call.1} parent=0
    _
  %s6 = ssub.s32 1, %s4
  %s7 = scalar_select 0, %s6, %s4
  %s9 = sshll.u32 %s0, 4
  %s10 = int_to_ptr.hbm [resolvable:$true] %s9
  %12 = dma.hbm_to_smem %s10, 16, [#allocation3], [#allocation2]
  %14 = dma.done [#allocation2], 16
  %15 = sfence
  $region1: #{tpu_custom_call.1} parent=0
    #allocation4 [shape = 'u8[16384]{0}', space=vmem, size = 0x4000, scoped, tag = 'input window, operand 1']
    #allocation5 [shape = 's32[2]{0}', space=sflag, size = 0x8, scoped, tag = 'scoped memory for tpu_custom_call.1']
    #allocation6 [shape = 's32[2]{0}', space=sflag, size = 0x8, scoped, tag = 'scoped memory for tpu_custom_call.1']
    #allocation7 [shape = 'u8[16384]{0}', space=vmem, size = 0x4000, scoped, tag = 'input window, operand 2']
    #allocation8 [shape = 's32[2]{0}', space=sflag, size = 0x8, scoped, tag = 'scoped memory for tpu_custom_call.1']
    #allocation9 [shape = 'u8[1024]{0}', space=vmem, size = 0x400, scoped, tag = 'output window, operand 0']
    %16 = vsyncpa [#allocation5], 0
    %s17 = scalar_lea.sflag [#allocation5], 1
    %18 = vsyncpa %s17, 0
    %19 = vsyncpa [#allocation8], 0
    %s20 = scalar_lea.sflag [#allocation8], 1
    %21 = vsyncpa %s20, 0
    %22 = vsyncpa [#allocation6], 0
    %s23 = scalar_lea.sflag [#allocation6], 1
    %24 = vsyncpa %s23, 0
    loop: start=0, step=1, limit=4
    $region2: #{tpu_custom_call.1} parent=1 // loop_pre_header
      _
    $region3: #{tpu_custom_call.1} parent=1 // loop_header
      %s26 = sphi 0, %s30
      %p27 = scmp.ge.s32.totalorder %s26, 4
      %s33 = sphi 0, %s45
      %s34 = sphi 0, %s41
      %s35 = sphi 0, %s33
      %s36 = sphi 0, %s34
      %s37 = sphi 0, %s35
      %s38 = sphi 0, %s36
      %s48 = sphi 0, %s50
      %s51 = sphi 0, %s48
      %s52 = sphi 0, %s51
      %s68 = sphi 0, %s52
      %s74 = sphi 0, %s76
      %s77 = sphi 0, %s74
      %s78 = sphi 0, %s77
      %s94 = sphi 0, %s78
      %s102 = sphi 0, %s104
      %s105 = sphi 0, %s102
      %s106 = sphi 0, %s105
      %s122 = sphi 0, %s106
    $region4: #{tpu_custom_call.1} parent=1 // loop_header_branch
      %29 = sbr.rel (%p27) target = $region8
    $region5: #{tpu_custom_call.1} parent=1 // loop_body
      %s31 = ssub.s32 %s26, 1
      %s32 = ssub.s32 %s26, 2
      %s39 = sadd.s32 1, %s34
      %p40 = scmp.ge.s32.totalorder %s39, 1
      %s41 = scalar_select %p40, 0, %s39
      %s42 = sadd.s32 1, %s33
      %s43 = scalar_select %p40, %s42, %s33
      %p44 = scmp.ge.s32.totalorder %s43, 2
      %s45 = scalar_select %p44, 0, %s43
      %s46 = ssub.s32 %s33, %s45
      %p47 = scmp.eq.s32.totalorder %s46, 0
      %s49 = sadd.s32 %s48, 1
      %s50 = scalar_select %p47, %s48, %s49
      %p53 = pneg %p47
      %p54 = scmp.eq.s32.totalorder %s26, 1
      %p55 = por %p53, %p54
      %p56 = scmp.ne.s32.totalorder %s48, %s51
      %p57 = scmp.eq.s32.totalorder %s26, 0
      %p58 = por %p56, %p57
      %p59 = scmp.ne.s32.totalorder %s48, %s51
      %p60 = scmp.eq.s32.totalorder %s31, 1
      %p61 = por %p59, %p60
      %p62 = scmp.ne.s32.totalorder %s51, %s52
      %p63 = scmp.eq.s32.totalorder %s31, 0
      %p64 = por %p62, %p63
      %p65 = scmp.ne.s32.totalorder %s51, %s52
      %p66 = scmp.eq.s32.totalorder %s32, 1
      %p67 = por %p65, %p66
      %p69 = scmp.ne.s32.totalorder %s52, %s68
      %p70 = scmp.eq.s32.totalorder %s32, 0
      %p71 = por %p69, %p70
      %s72 = ssub.s32 %s33, %s45
      %p73 = scmp.eq.s32.totalorder %s72, 0
      %s75 = sadd.s32 %s74, 1
      %s76 = scalar_select %p73, %s74, %s75
      %p79 = pneg %p73
      %p80 = scmp.eq.s32.totalorder %s26, 1
      %p81 = por %p79, %p80
      %p82 = scmp.ne.s32.totalorder %s74, %s77
      %p83 = scmp.eq.s32.totalorder %s26, 0
      %p84 = por %p82, %p83
      %p85 = scmp.ne.s32.totalorder %s74, %s77
      %p86 = scmp.eq.s32.totalorder %s31, 1
      %p87 = por %p85, %p86
      %p88 = scmp.ne.s32.totalorder %s77, %s78
      %p89 = scmp.eq.s32.totalorder %s31, 0
      %p90 = por %p88, %p89
      %p91 = scmp.ne.s32.totalorder %s77, %s78
      %p92 = scmp.eq.s32.totalorder %s32, 1
      %p93 = por %p91, %p92
      %p95 = scmp.ne.s32.totalorder %s78, %s94
      %p96 = scmp.eq.s32.totalorder %s32, 0
      %p97 = por %p95, %p96
      %s98 = ssub.s32 %s33, %s45
      %s99 = ssub.s32 %s34, %s41
      %s100 = sor.u32 %s98, %s99
      %p101 = scmp.eq.s32.totalorder %s100, 0
      %s103 = sadd.s32 %s102, 1
      %s104 = scalar_select %p101, %s102, %s103
      %p107 = pneg %p101
      %p108 = scmp.eq.s32.totalorder %s26, 1
      %p109 = por %p107, %p108
      %p110 = scmp.ne.s32.totalorder %s102, %s105
      %p111 = scmp.eq.s32.totalorder %s26, 0
      %p112 = por %p110, %p111
      %p113 = scmp.ne.s32.totalorder %s102, %s105
      %p114 = scmp.eq.s32.totalorder %s31, 1
      %p115 = por %p113, %p114
      %p116 = scmp.ne.s32.totalorder %s105, %s106
      %p117 = scmp.eq.s32.totalorder %s31, 0
      %p118 = por %p116, %p117
      %p119 = scmp.ne.s32.totalorder %s105, %s106
      %p120 = scmp.eq.s32.totalorder %s32, 1
      %p121 = por %p119, %p120
      %p123 = scmp.ne.s32.totalorder %s106, %s122
      %p124 = scmp.eq.s32.totalorder %s32, 0
      %p125 = por %p123, %p124
      %p126 = scmp.le.s32.totalorder 1, %s26
      %p127 = scmp.lt.s32.totalorder %s26, 3
      %p128 = pnand %p126, %p127
      %p129 = pneg %p128
      // Predicated region
      $region9: #{tpu_custom_call.1} parent=5 // pred_check
        _
      $region10: #{tpu_custom_call.1} parent=5 // pred_check_branch
        %131 = sbr.rel (%p128) target = $region12
      $region11: #{tpu_custom_call.1} parent=5 // pred_region
        %s132 = ssub.s32 %s26, 1
      $region12: #{tpu_custom_call.1} parent=5 // pred_fallthru
        _
      %p133 = scmp.lt.s32.totalorder %s26, 2
      // Predicated region
      $region13: #{tpu_custom_call.1} parent=5 // pred_check
        %p134 = pneg %p133
      $region14: #{tpu_custom_call.1} parent=5 // pred_check_branch
        %136 = sbr.rel (%p134) target = $region16
      $region15: #{tpu_custom_call.1} parent=5 // pred_region
        // Predicated region
        $region17: #{tpu_custom_call.1} parent=15 // pred_check
          %p137 = pneg %p58
        $region18: #{tpu_custom_call.1} parent=15 // pred_check_branch
          %139 = sbr.rel (%p137) target = $region20
        $region19: #{tpu_custom_call.1} parent=15 // pred_region
          %s140 = sand.u32 %s48, 1
          %s141 = scalar_lea.sflag [#allocation5], %s140
          %s142 = sand.u32 %s48, 1
          %s143 = smul.addr %s142, 16
          %s144 = scalar_lea.vmem [#allocation4], %s143
          %146 = vsyncadd %s141, 0
          %s147 = smul.addr %s33, 2
          %s148 = smul.addr %s147, 8
          %s149 = scalar_lea.hbm %s1, %s148
          %s150 = sshll.u32 %s149, 4
          %s151 = int_to_ptr.hbm [resolvable:$true] %s150
          %s152 = sshll.u32 %s144, 4
          %s153 = int_to_ptr.vmem [resolvable:$true] %s152
          %158 = dma.hbm_to_vmem [thread:$0]  %s151, 256, %s153, %s141, 128, 128, 8
        $region20: #{tpu_custom_call.1} parent=15 // pred_fallthru
          _
        // Predicated region
        $region21: #{tpu_custom_call.1} parent=15 // pred_check
          %p159 = pneg %p84
        $region22: #{tpu_custom_call.1} parent=15 // pred_check_branch
          %161 = sbr.rel (%p159) target = $region24
        $region23: #{tpu_custom_call.1} parent=15 // pred_region
          %s162 = sand.u32 %s74, 1
          %s163 = scalar_lea.sflag [#allocation8], %s162
          %s164 = sand.u32 %s74, 1
          %s165 = smul.addr %s164, 16
          %s166 = scalar_lea.vmem [#allocation7], %s165
          %168 = vsyncadd %s163, 0
          %s169 = smul.addr %s33, 2
          %s170 = smul.addr %s169, 8
          %s171 = scalar_lea.hbm %s2, %s170
          %s172 = sshll.u32 %s171, 4
          %s173 = int_to_ptr.hbm [resolvable:$true] %s172
          %s174 = sshll.u32 %s166, 4
          %s175 = int_to_ptr.vmem [resolvable:$true] %s174
          %180 = dma.hbm_to_vmem [thread:$0]  %s173, 256, %s175, %s163, 128, 128, 8
        $region24: #{tpu_custom_call.1} parent=15 // pred_fallthru
          _
      $region16: #{tpu_custom_call.1} parent=5 // pred_fallthru
        _
      %p181 = scmp.le.s32.totalorder 1, %s26
      %p182 = scmp.lt.s32.totalorder %s26, 3
      %p183 = pnand %p181, %p182
      %p184 = pneg %p183
      // Predicated region
      $region25: #{tpu_custom_call.1} parent=5 // pred_check
        _
      $region26: #{tpu_custom_call.1} parent=5 // pred_check_branch
        %186 = sbr.rel (%p183) target = $region28
      $region27: #{tpu_custom_call.1} parent=5 // pred_region
        %s187 = ssub.s32 %s26, 1
        %s188 = sand.u32 %s51, 1
        %s189 = scalar_lea.sflag [#allocation5], %s188
        %s190 = sand.u32 %s51, 1
        %s191 = smul.addr %s190, 16
        %s192 = scalar_lea.vmem [#allocation4], %s191
        // Predicated region
        $region29: #{tpu_custom_call.1} parent=27 // pred_check
          %p193 = pneg %p64
        $region30: #{tpu_custom_call.1} parent=27 // pred_check_branch
          %195 = sbr.rel (%p193) target = $region32
        $region31: #{tpu_custom_call.1} parent=27 // pred_region
          %197 = dma.done %s189, 256
        $region32: #{tpu_custom_call.1} parent=27 // pred_fallthru
          _
        %s198 = sand.u32 %s77, 1
        %s199 = scalar_lea.sflag [#allocation8], %s198
        %s200 = sand.u32 %s77, 1
        %s201 = smul.addr %s200, 16
        %s202 = scalar_lea.vmem [#allocation7], %s201
        // Predicated region
        $region33: #{tpu_custom_call.1} parent=27 // pred_check
          %p203 = pneg %p90
        $region34: #{tpu_custom_call.1} parent=27 // pred_check_branch
          %205 = sbr.rel (%p203) target = $region36
        $region35: #{tpu_custom_call.1} parent=27 // pred_region
          %207 = dma.done %s199, 256
        $region36: #{tpu_custom_call.1} parent=27 // pred_fallthru
          _
        %s208 = sand.u32 %s51, 1
        %s209 = scalar_lea.sflag [#allocation5], %s208
        %s210 = sand.u32 %s51, 1
        %s211 = smul.addr %s210, 16
        %s212 = scalar_lea.vmem [#allocation4], %s211
        %p213 = pneg %p64
        %p214 = pneg %p61
        %s215 = sand.u32 %s77, 1
        %s216 = scalar_lea.sflag [#allocation8], %s215
        %s217 = sand.u32 %s77, 1
        %s218 = smul.addr %s217, 16
        %s219 = scalar_lea.vmem [#allocation7], %s218
        %p220 = pneg %p90
        %p221 = pneg %p87
        %p222 = pneg %p118
        %p223 = pneg %p115
        %s224 = sand.u32 %s105, 1
        %s225 = scalar_lea.sflag [#allocation6], %s224
        %s226 = sand.u32 %s105, 1
        %s227 = scalar_lea.vmem [#allocation9], %s226
        %s228 = sld [smem:[#allocation3 + %s35]]
        %v229 = vld [vmem:[%s192] sm:$0xff]
        %v230 = vld [vmem:[%s192 + $0x8] sm:$0xff]
        %v231 = vld [vmem:[%s202] sm:$0xff]
        %v232 = vld [vmem:[%s202 + $0x8] sm:$0xff]
        %v233 = vlaneseq
        %v234 = vshrl.u32 %v233, 7
        %v235 = vadd.s32 %v234, 8
        %v236 = vlaneseq
        %v237 = vand.u32 %v236, 127
        %vm238 = vcmp.ge.s32.totalorder %v237, %v234
        %vm239 = vcmp.ge.s32.totalorder %v237, %v235
        %v240 = vadd.s32 %v234, 7
        %v241 = vadd.s32 %v235, 7
        %vm242 = vcmp.lt.s32.totalorder %v237, %v240
        %vm243 = vcmp.lt.s32.totalorder %v237, %v241
        %vm244 = vmand %vm238, %vm242
        %vm245 = vmand %vm239, %vm243
        %v246 = vsel %vm244, 1, 0
        %v247 = vsel %vm245, 1, 0
        %v248 = vcvt.s32.f32 %v246
        %v249 = vcvt.s32.f32 %v247
        %vm250 = vcmp.ge.s32.totalorder %v234, %v237
        %vm251 = vcmp.ge.s32.totalorder %v235, %v237
        %v252 = vadd.s32 %v237, 7
        %vm253 = vcmp.lt.s32.totalorder %v234, %v252
        %vm254 = vcmp.lt.s32.totalorder %v235, %v252
        %vm255 = vmand %vm250, %vm253
        %vm256 = vmand %vm251, %vm254
        %v257 = vsel %vm255, 1, 0
        %v258 = vsel %vm256, 1, 0
        %v259 = vcvt.s32.f32 %v257
        %v260 = vcvt.s32.f32 %v258
        %vm261 = vcmask 130048
        %v263 = vsel %vm261, %v248, 0
        %v266 = vsel %vm261, %v249, 0
        %268 = vmatpush.msra.mxu0 0.0
        %269 = vmatpush.msra.mxu0 0.0
        %270 = vmatpush.msra.mxu0 0.0
        %271 = vmatpush.msra.mxu0 0.0
        %272 = vmatpush.msra.mxu0 0.0
        %273 = vmatpush.msra.mxu0 0.0
        %274 = vmatpush.msra.mxu0 0.0
        %275 = vmatpush.msra.mxu0 0.0
        %276 = vmatpush.msra.mxu0 0.0
        %277 = vmatpush.msra.mxu0 0.0
        %278 = vmatpush.msra.mxu0 0.0
        %279 = vmatpush.msra.mxu0 0.0
        %280 = vmatpush.msra.mxu0 0.0
        %281 = vmatpush.msra.mxu0 0.0
        %v282 = vand.u32 %v230, 4294901760
        %283 = vmatpush.msra.mxu0 %v282
        %v284 = vand.u32 %v229, 4294901760
        %285 = vmatpush.msra.mxu0 %v284
        %v286 = vand.u32 %v263, 4294901760
        %v287 = vsub.f32 %v263, %v286
        %v288 = vand.u32 %v287, 4294901760
        %v289 = vsub.f32 %v287, %v288
        %v290 = vand.u32 %v289, 4294901760
        %291 = vmatmul.f32.gmra.mxu0 %v290
        %v292 = vpop.f32.mrf.mxu0
        %v293 = vadd.f32 0.0, %v292
        %v294 = vand.u32 %v266, 4294901760
        %v295 = vsub.f32 %v266, %v294
        %v296 = vand.u32 %v295, 4294901760
        %v297 = vsub.f32 %v295, %v296
        %v298 = vand.u32 %v297, 4294901760
        %299 = vmatmul.f32.gmra.mxu0 %v298
        %v300 = vpop.f32.mrf.mxu0
        %v301 = vadd.f32 0.0, %v300
        %302 = vdwg.mxu0
        %303 = vmatpush.msra.mxu0 0.0
        %304 = vmatpush.msra.mxu0 0.0
        %305 = vmatpush.msra.mxu0 0.0
        %306 = vmatpush.msra.mxu0 0.0
        %307 = vmatpush.msra.mxu0 0.0
        %308 = vmatpush.msra.mxu0 0.0
        %309 = vmatpush.msra.mxu0 0.0
        %310 = vmatpush.msra.mxu0 0.0
        %311 = vmatpush.msra.mxu0 0.0
        %312 = vmatpush.msra.mxu0 0.0
        %313 = vmatpush.msra.mxu0 0.0
        %314 = vmatpush.msra.mxu0 0.0
        %315 = vmatpush.msra.mxu0 0.0
        %316 = vmatpush.msra.mxu0 0.0
        %v317 = vand.u32 %v230, 4294901760
        %v318 = vsub.f32 %v230, %v317
        %v319 = vand.u32 %v318, 4294901760
        %v320 = vsub.f32 %v318, %v319
        %v321 = vand.u32 %v320, 4294901760
        %322 = vmatpush.msra.mxu0 %v321
        %v323 = vand.u32 %v229, 4294901760
        %v324 = vsub.f32 %v229, %v323
        %v325 = vand.u32 %v324, 4294901760
        %v326 = vsub.f32 %v324, %v325
        %v327 = vand.u32 %v326, 4294901760
        %328 = vmatpush.msra.mxu0 %v327
        %v329 = vand.u32 %v263, 4294901760
        %330 = vmatmul.f32.gmra.mxu0 %v329
        %v331 = vpop.f32.mrf.mxu0
        %v332 = vadd.f32 %v293, %v331
        %v333 = vand.u32 %v266, 4294901760
        %334 = vmatmul.f32.gmra.mxu0 %v333
        %v335 = vpop.f32.mrf.mxu0
        %v336 = vadd.f32 %v301, %v335
        %337 = vdwg.mxu0
        %338 = vmatpush.msra.mxu0 0.0
        %339 = vmatpush.msra.mxu0 0.0
        %340 = vmatpush.msra.mxu0 0.0
        %341 = vmatpush.msra.mxu0 0.0
        %342 = vmatpush.msra.mxu0 0.0
        %343 = vmatpush.msra.mxu0 0.0
        %344 = vmatpush.msra.mxu0 0.0
        %345 = vmatpush.msra.mxu0 0.0
        %346 = vmatpush.msra.mxu0 0.0
        %347 = vmatpush.msra.mxu0 0.0
        %348 = vmatpush.msra.mxu0 0.0
        %349 = vmatpush.msra.mxu0 0.0
        %350 = vmatpush.msra.mxu0 0.0
        %351 = vmatpush.msra.mxu0 0.0
        %v352 = vand.u32 %v230, 4294901760
        %v353 = vsub.f32 %v230, %v352
        %354 = vmatpush.msra.mxu0 %v353
        %v355 = vand.u32 %v229, 4294901760
        %v356 = vsub.f32 %v229, %v355
        %357 = vmatpush.msra.mxu0 %v356
        %v358 = vand.u32 %v263, 4294901760
        %v359 = vsub.f32 %v263, %v358
        %360 = vmatmul.f32.gmra.mxu0 %v359
        %v361 = vpop.f32.mrf.mxu0
        %v362 = vadd.f32 %v332, %v361
        %v363 = vand.u32 %v266, 4294901760
        %v364 = vsub.f32 %v266, %v363
        %365 = vmatmul.f32.gmra.mxu0 %v364
        %v366 = vpop.f32.mrf.mxu0
        %v367 = vadd.f32 %v336, %v366
        %368 = vdwg.mxu0
        %369 = vmatpush.msra.mxu0 0.0
        %370 = vmatpush.msra.mxu0 0.0
        %371 = vmatpush.msra.mxu0 0.0
        %372 = vmatpush.msra.mxu0 0.0
        %373 = vmatpush.msra.mxu0 0.0
        %374 = vmatpush.msra.mxu0 0.0
        %375 = vmatpush.msra.mxu0 0.0
        %376 = vmatpush.msra.mxu0 0.0
        %377 = vmatpush.msra.mxu0 0.0
        %378 = vmatpush.msra.mxu0 0.0
        %379 = vmatpush.msra.mxu0 0.0
        %380 = vmatpush.msra.mxu0 0.0
        %381 = vmatpush.msra.mxu0 0.0
        %382 = vmatpush.msra.mxu0 0.0
        %v383 = vand.u32 %v230, 4294901760
        %384 = vmatpush.msra.mxu0 %v383
        %v385 = vand.u32 %v229, 4294901760
        %386 = vmatpush.msra.mxu0 %v385
        %v387 = vand.u32 %v263, 4294901760
        %v388 = vsub.f32 %v263, %v387
        %v389 = vand.u32 %v388, 4294901760
        %390 = vmatmul.f32.gmra.mxu0 %v389
        %v391 = vpop.f32.mrf.mxu0
        %v392 = vadd.f32 %v362, %v391
        %v393 = vand.u32 %v266, 4294901760
        %v394 = vsub.f32 %v266, %v393
        %v395 = vand.u32 %v394, 4294901760
        %396 = vmatmul.f32.gmra.mxu0 %v395
        %v397 = vpop.f32.mrf.mxu0
        %v398 = vadd.f32 %v367, %v397
        %399 = vdwg.mxu0
        %400 = vmatpush.msra.mxu0 0.0
        %401 = vmatpush.msra.mxu0 0.0
        %402 = vmatpush.msra.mxu0 0.0
        %403 = vmatpush.msra.mxu0 0.0
        %404 = vmatpush.msra.mxu0 0.0
        %405 = vmatpush.msra.mxu0 0.0
        %406 = vmatpush.msra.mxu0 0.0
        %407 = vmatpush.msra.mxu0 0.0
        %408 = vmatpush.msra.mxu0 0.0
        %409 = vmatpush.msra.mxu0 0.0
        %410 = vmatpush.msra.mxu0 0.0
        %411 = vmatpush.msra.mxu0 0.0
        %412 = vmatpush.msra.mxu0 0.0
        %413 = vmatpush.msra.mxu0 0.0
        %v414 = vand.u32 %v230, 4294901760
        %v415 = vsub.f32 %v230, %v414
        %v416 = vand.u32 %v415, 4294901760
        %417 = vmatpush.msra.mxu0 %v416
        %v418 = vand.u32 %v229, 4294901760
        %v419 = vsub.f32 %v229, %v418
        %v420 = vand.u32 %v419, 4294901760
        %421 = vmatpush.msra.mxu0 %v420
        %v422 = vand.u32 %v263, 4294901760
        %423 = vmatmul.f32.gmra.mxu0 %v422
        %v424 = vpop.f32.mrf.mxu0
        %v425 = vadd.f32 %v392, %v424
        %v426 = vand.u32 %v266, 4294901760
        %427 = vmatmul.f32.gmra.mxu0 %v426
        %v428 = vpop.f32.mrf.mxu0
        %v429 = vadd.f32 %v398, %v428
        %430 = vdwg.mxu0
        %431 = vmatpush.msra.mxu0 0.0
        %432 = vmatpush.msra.mxu0 0.0
        %433 = vmatpush.msra.mxu0 0.0
        %434 = vmatpush.msra.mxu0 0.0
        %435 = vmatpush.msra.mxu0 0.0
        %436 = vmatpush.msra.mxu0 0.0
        %437 = vmatpush.msra.mxu0 0.0
        %438 = vmatpush.msra.mxu0 0.0
        %439 = vmatpush.msra.mxu0 0.0
        %440 = vmatpush.msra.mxu0 0.0
        %441 = vmatpush.msra.mxu0 0.0
        %442 = vmatpush.msra.mxu0 0.0
        %443 = vmatpush.msra.mxu0 0.0
        %444 = vmatpush.msra.mxu0 0.0
        %v445 = vand.u32 %v230, 4294901760
        %446 = vmatpush.msra.mxu0 %v445
        %v447 = vand.u32 %v229, 4294901760
        %448 = vmatpush.msra.mxu0 %v447
        %v449 = vand.u32 %v263, 4294901760
        %450 = vmatmul.f32.gmra.mxu0 %v449
        %v451 = vpop.f32.mrf.mxu0
        %v452 = vadd.f32 %v425, %v451
        %v453 = vand.u32 %v266, 4294901760
        %454 = vmatmul.f32.gmra.mxu0 %v453
        %v455 = vpop.f32.mrf.mxu0
        %v456 = vadd.f32 %v429, %v455
        %457 = vdwg.mxu0
        %v459 = vsel %vm261, %v452, 0
        %v462 = vsel %vm261, %v456, 0
        %464 = vmatpush.msra.mxu0 0.0
        %465 = vmatpush.msra.mxu0 0.0
        %466 = vmatpush.msra.mxu0 0.0
        %467 = vmatpush.msra.mxu0 0.0
        %468 = vmatpush.msra.mxu0 0.0
        %469 = vmatpush.msra.mxu0 0.0
        %470 = vmatpush.msra.mxu0 0.0
        %471 = vmatpush.msra.mxu0 0.0
        %472 = vmatpush.msra.mxu0 0.0
        %473 = vmatpush.msra.mxu0 0.0
        %474 = vmatpush.msra.mxu0 0.0
        %475 = vmatpush.msra.mxu0 0.0
        %476 = vmatpush.msra.mxu0 0.0
        %477 = vmatpush.msra.mxu0 0.0
        %v478 = vand.u32 %v260, 4294901760
        %479 = vmatpush.msra.mxu0 %v478
        %v480 = vand.u32 %v259, 4294901760
        %481 = vmatpush.msra.mxu0 %v480
        %v482 = vand.u32 %v459, 4294901760
        %v483 = vsub.f32 %v459, %v482
        %v484 = vand.u32 %v483, 4294901760
        %v485 = vsub.f32 %v483, %v484
        %v486 = vand.u32 %v485, 4294901760
        %487 = vmatmul.f32.gmra.mxu0 %v486
        %v488 = vpop.f32.mrf.mxu0
        %v489 = vadd.f32 0.0, %v488
        %v490 = vand.u32 %v462, 4294901760
        %v491 = vsub.f32 %v462, %v490
        %v492 = vand.u32 %v491, 4294901760
        %v493 = vsub.f32 %v491, %v492
        %v494 = vand.u32 %v493, 4294901760
        %495 = vmatmul.f32.gmra.mxu0 %v494
        %v496 = vpop.f32.mrf.mxu0
        %v497 = vadd.f32 0.0, %v496
        %498 = vdwg.mxu0
        %499 = vmatpush.msra.mxu0 0.0
        %500 = vmatpush.msra.mxu0 0.0
        %501 = vmatpush.msra.mxu0 0.0
        %502 = vmatpush.msra.mxu0 0.0
        %503 = vmatpush.msra.mxu0 0.0
        %504 = vmatpush.msra.mxu0 0.0
        %505 = vmatpush.msra.mxu0 0.0
        %506 = vmatpush.msra.mxu0 0.0
        %507 = vmatpush.msra.mxu0 0.0
        %508 = vmatpush.msra.mxu0 0.0
        %509 = vmatpush.msra.mxu0 0.0
        %510 = vmatpush.msra.mxu0 0.0
        %511 = vmatpush.msra.mxu0 0.0
        %512 = vmatpush.msra.mxu0 0.0
        %v513 = vand.u32 %v260, 4294901760
        %v514 = vsub.f32 %v260, %v513
        %v515 = vand.u32 %v514, 4294901760
        %v516 = vsub.f32 %v514, %v515
        %v517 = vand.u32 %v516, 4294901760
        %518 = vmatpush.msra.mxu0 %v517
        %v519 = vand.u32 %v259, 4294901760
        %v520 = vsub.f32 %v259, %v519
        %v521 = vand.u32 %v520, 4294901760
        %v522 = vsub.f32 %v520, %v521
        %v523 = vand.u32 %v522, 4294901760
        %524 = vmatpush.msra.mxu0 %v523
        %v525 = vand.u32 %v459, 4294901760
        %526 = vmatmul.f32.gmra.mxu0 %v525
        %v527 = vpop.f32.mrf.mxu0
        %v528 = vadd.f32 %v489, %v527
        %v529 = vand.u32 %v462, 4294901760
        %530 = vmatmul.f32.gmra.mxu0 %v529
        %v531 = vpop.f32.mrf.mxu0
        %v532 = vadd.f32 %v497, %v531
        %533 = vdwg.mxu0
        %534 = vmatpush.msra.mxu0 0.0
        %535 = vmatpush.msra.mxu0 0.0
        %536 = vmatpush.msra.mxu0 0.0
        %537 = vmatpush.msra.mxu0 0.0
        %538 = vmatpush.msra.mxu0 0.0
        %539 = vmatpush.msra.mxu0 0.0
        %540 = vmatpush.msra.mxu0 0.0
        %541 = vmatpush.msra.mxu0 0.0
        %542 = vmatpush.msra.mxu0 0.0
        %543 = vmatpush.msra.mxu0 0.0
        %544 = vmatpush.msra.mxu0 0.0
        %545 = vmatpush.msra.mxu0 0.0
        %546 = vmatpush.msra.mxu0 0.0
        %547 = vmatpush.msra.mxu0 0.0
        %v548 = vand.u32 %v260, 4294901760
        %v549 = vsub.f32 %v260, %v548
        %550 = vmatpush.msra.mxu0 %v549
        %v551 = vand.u32 %v259, 4294901760
        %v552 = vsub.f32 %v259, %v551
        %553 = vmatpush.msra.mxu0 %v552
        %v554 = vand.u32 %v459, 4294901760
        %v555 = vsub.f32 %v459, %v554
        %556 = vmatmul.f32.gmra.mxu0 %v555
        %v557 = vpop.f32.mrf.mxu0
        %v558 = vadd.f32 %v528, %v557
        %v559 = vand.u32 %v462, 4294901760
        %v560 = vsub.f32 %v462, %v559
        %561 = vmatmul.f32.gmra.mxu0 %v560
        %v562 = vpop.f32.mrf.mxu0
        %v563 = vadd.f32 %v532, %v562
        %564 = vdwg.mxu0
        %565 = vmatpush.msra.mxu0 0.0
        %566 = vmatpush.msra.mxu0 0.0
        %567 = vmatpush.msra.mxu0 0.0
        %568 = vmatpush.msra.mxu0 0.0
        %569 = vmatpush.msra.mxu0 0.0
        %570 = vmatpush.msra.mxu0 0.0
        %571 = vmatpush.msra.mxu0 0.0
        %572 = vmatpush.msra.mxu0 0.0
        %573 = vmatpush.msra.mxu0 0.0
        %574 = vmatpush.msra.mxu0 0.0
        %575 = vmatpush.msra.mxu0 0.0
        %576 = vmatpush.msra.mxu0 0.0
        %577 = vmatpush.msra.mxu0 0.0
        %578 = vmatpush.msra.mxu0 0.0
        %v579 = vand.u32 %v260, 4294901760
        %580 = vmatpush.msra.mxu0 %v579
        %v581 = vand.u32 %v259, 4294901760
        %582 = vmatpush.msra.mxu0 %v581
        %v583 = vand.u32 %v459, 4294901760
        %v584 = vsub.f32 %v459, %v583
        %v585 = vand.u32 %v584, 4294901760
        %586 = vmatmul.f32.gmra.mxu0 %v585
        %v587 = vpop.f32.mrf.mxu0
        %v588 = vadd.f32 %v558, %v587
        %v589 = vand.u32 %v462, 4294901760
        %v590 = vsub.f32 %v462, %v589
        %v591 = vand.u32 %v590, 4294901760
        %592 = vmatmul.f32.gmra.mxu0 %v591
        %v593 = vpop.f32.mrf.mxu0
        %v594 = vadd.f32 %v563, %v593
        %595 = vdwg.mxu0
        %596 = vmatpush.msra.mxu0 0.0
        %597 = vmatpush.msra.mxu0 0.0
        %598 = vmatpush.msra.mxu0 0.0
        %599 = vmatpush.msra.mxu0 0.0
        %600 = vmatpush.msra.mxu0 0.0
        %601 = vmatpush.msra.mxu0 0.0
        %602 = vmatpush.msra.mxu0 0.0
        %603 = vmatpush.msra.mxu0 0.0
        %604 = vmatpush.msra.mxu0 0.0
        %605 = vmatpush.msra.mxu0 0.0
        %606 = vmatpush.msra.mxu0 0.0
        %607 = vmatpush.msra.mxu0 0.0
        %608 = vmatpush.msra.mxu0 0.0
        %609 = vmatpush.msra.mxu0 0.0
        %v610 = vand.u32 %v260, 4294901760
        %v611 = vsub.f32 %v260, %v610
        %v612 = vand.u32 %v611, 4294901760
        %613 = vmatpush.msra.mxu0 %v612
        %v614 = vand.u32 %v259, 4294901760
        %v615 = vsub.f32 %v259, %v614
        %v616 = vand.u32 %v615, 4294901760
        %617 = vmatpush.msra.mxu0 %v616
        %v618 = vand.u32 %v459, 4294901760
        %619 = vmatmul.f32.gmra.mxu0 %v618
        %v620 = vpop.f32.mrf.mxu0
        %v621 = vadd.f32 %v588, %v620
        %v622 = vand.u32 %v462, 4294901760
        %623 = vmatmul.f32.gmra.mxu0 %v622
        %v624 = vpop.f32.mrf.mxu0
        %v625 = vadd.f32 %v594, %v624
        %626 = vdwg.mxu0
        %627 = vmatpush.msra.mxu0 0.0
        %628 = vmatpush.msra.mxu0 0.0
        %629 = vmatpush.msra.mxu0 0.0
        %630 = vmatpush.msra.mxu0 0.0
        %631 = vmatpush.msra.mxu0 0.0
        %632 = vmatpush.msra.mxu0 0.0
        %633 = vmatpush.msra.mxu0 0.0
        %634 = vmatpush.msra.mxu0 0.0
        %635 = vmatpush.msra.mxu0 0.0
        %636 = vmatpush.msra.mxu0 0.0
        %637 = vmatpush.msra.mxu0 0.0
        %638 = vmatpush.msra.mxu0 0.0
        %639 = vmatpush.msra.mxu0 0.0
        %640 = vmatpush.msra.mxu0 0.0
        %v641 = vand.u32 %v260, 4294901760
        %642 = vmatpush.msra.mxu0 %v641
        %v643 = vand.u32 %v259, 4294901760
        %644 = vmatpush.msra.mxu0 %v643
        %v645 = vand.u32 %v459, 4294901760
        %646 = vmatmul.f32.gmra.mxu0 %v645
        %v647 = vpop.f32.mrf.mxu0
        %v648 = vadd.f32 %v621, %v647
        %v649 = vand.u32 %v462, 4294901760
        %650 = vmatmul.f32.gmra.mxu0 %v649
        %v651 = vpop.f32.mrf.mxu0
        %v652 = vadd.f32 %v625, %v651
        %653 = vdwg.mxu0
        %v654 = vmul.f32 %v648, 0.020408163
        %v655 = vmul.f32 %v652, 0.020408163
        %656 = vmatpush.msra.mxu0 0.0
        %657 = vmatpush.msra.mxu0 0.0
        %658 = vmatpush.msra.mxu0 0.0
        %659 = vmatpush.msra.mxu0 0.0
        %660 = vmatpush.msra.mxu0 0.0
        %661 = vmatpush.msra.mxu0 0.0
        %662 = vmatpush.msra.mxu0 0.0
        %663 = vmatpush.msra.mxu0 0.0
        %664 = vmatpush.msra.mxu0 0.0
        %665 = vmatpush.msra.mxu0 0.0
        %666 = vmatpush.msra.mxu0 0.0
        %667 = vmatpush.msra.mxu0 0.0
        %668 = vmatpush.msra.mxu0 0.0
        %669 = vmatpush.msra.mxu0 0.0
        %v670 = vand.u32 %v232, 4294901760
        %671 = vmatpush.msra.mxu0 %v670
        %v672 = vand.u32 %v231, 4294901760
        %673 = vmatpush.msra.mxu0 %v672
        %v674 = vand.u32 %v263, 4294901760
        %v675 = vsub.f32 %v263, %v674
        %v676 = vand.u32 %v675, 4294901760
        %v677 = vsub.f32 %v675, %v676
        %v678 = vand.u32 %v677, 4294901760
        %679 = vmatmul.f32.gmra.mxu0 %v678
        %v680 = vpop.f32.mrf.mxu0
        %v681 = vadd.f32 0.0, %v680
        %v682 = vand.u32 %v266, 4294901760
        %v683 = vsub.f32 %v266, %v682
        %v684 = vand.u32 %v683, 4294901760
        %v685 = vsub.f32 %v683, %v684
        %v686 = vand.u32 %v685, 4294901760
        %687 = vmatmul.f32.gmra.mxu0 %v686
        %v688 = vpop.f32.mrf.mxu0
        %v689 = vadd.f32 0.0, %v688
        %690 = vdwg.mxu0
        %691 = vmatpush.msra.mxu0 0.0
        %692 = vmatpush.msra.mxu0 0.0
        %693 = vmatpush.msra.mxu0 0.0
        %694 = vmatpush.msra.mxu0 0.0
        %695 = vmatpush.msra.mxu0 0.0
        %696 = vmatpush.msra.mxu0 0.0
        %697 = vmatpush.msra.mxu0 0.0
        %698 = vmatpush.msra.mxu0 0.0
        %699 = vmatpush.msra.mxu0 0.0
        %700 = vmatpush.msra.mxu0 0.0
        %701 = vmatpush.msra.mxu0 0.0
        %702 = vmatpush.msra.mxu0 0.0
        %703 = vmatpush.msra.mxu0 0.0
        %704 = vmatpush.msra.mxu0 0.0
        %v705 = vand.u32 %v232, 4294901760
        %v706 = vsub.f32 %v232, %v705
        %v707 = vand.u32 %v706, 4294901760
        %v708 = vsub.f32 %v706, %v707
        %v709 = vand.u32 %v708, 4294901760
        %710 = vmatpush.msra.mxu0 %v709
        %v711 = vand.u32 %v231, 4294901760
        %v712 = vsub.f32 %v231, %v711
        %v713 = vand.u32 %v712, 4294901760
        %v714 = vsub.f32 %v712, %v713
        %v715 = vand.u32 %v714, 4294901760
        %716 = vmatpush.msra.mxu0 %v715
        %v717 = vand.u32 %v263, 4294901760
        %718 = vmatmul.f32.gmra.mxu0 %v717
        %v719 = vpop.f32.mrf.mxu0
        %v720 = vadd.f32 %v681, %v719
        %v721 = vand.u32 %v266, 4294901760
        %722 = vmatmul.f32.gmra.mxu0 %v721
        %v723 = vpop.f32.mrf.mxu0
        %v724 = vadd.f32 %v689, %v723
        %725 = vdwg.mxu0
        %726 = vmatpush.msra.mxu0 0.0
        %727 = vmatpush.msra.mxu0 0.0
        %728 = vmatpush.msra.mxu0 0.0
        %729 = vmatpush.msra.mxu0 0.0
        %730 = vmatpush.msra.mxu0 0.0
        %731 = vmatpush.msra.mxu0 0.0
        %732 = vmatpush.msra.mxu0 0.0
        %733 = vmatpush.msra.mxu0 0.0
        %734 = vmatpush.msra.mxu0 0.0
        %735 = vmatpush.msra.mxu0 0.0
        %736 = vmatpush.msra.mxu0 0.0
        %737 = vmatpush.msra.mxu0 0.0
        %738 = vmatpush.msra.mxu0 0.0
        %739 = vmatpush.msra.mxu0 0.0
        %v740 = vand.u32 %v232, 4294901760
        %v741 = vsub.f32 %v232, %v740
        %742 = vmatpush.msra.mxu0 %v741
        %v743 = vand.u32 %v231, 4294901760
        %v744 = vsub.f32 %v231, %v743
        %745 = vmatpush.msra.mxu0 %v744
        %v746 = vand.u32 %v263, 4294901760
        %v747 = vsub.f32 %v263, %v746
        %748 = vmatmul.f32.gmra.mxu0 %v747
        %v749 = vpop.f32.mrf.mxu0
        %v750 = vadd.f32 %v720, %v749
        %v751 = vand.u32 %v266, 4294901760
        %v752 = vsub.f32 %v266, %v751
        %753 = vmatmul.f32.gmra.mxu0 %v752
        %v754 = vpop.f32.mrf.mxu0
        %v755 = vadd.f32 %v724, %v754
        %756 = vdwg.mxu0
        %757 = vmatpush.msra.mxu0 0.0
        %758 = vmatpush.msra.mxu0 0.0
        %759 = vmatpush.msra.mxu0 0.0
        %760 = vmatpush.msra.mxu0 0.0
        %761 = vmatpush.msra.mxu0 0.0
        %762 = vmatpush.msra.mxu0 0.0
        %763 = vmatpush.msra.mxu0 0.0
        %764 = vmatpush.msra.mxu0 0.0
        %765 = vmatpush.msra.mxu0 0.0
        %766 = vmatpush.msra.mxu0 0.0
        %767 = vmatpush.msra.mxu0 0.0
        %768 = vmatpush.msra.mxu0 0.0
        %769 = vmatpush.msra.mxu0 0.0
        %770 = vmatpush.msra.mxu0 0.0
        %v771 = vand.u32 %v232, 4294901760
        %772 = vmatpush.msra.mxu0 %v771
        %v773 = vand.u32 %v231, 4294901760
        %774 = vmatpush.msra.mxu0 %v773
        %v775 = vand.u32 %v263, 4294901760
        %v776 = vsub.f32 %v263, %v775
        %v777 = vand.u32 %v776, 4294901760
        %778 = vmatmul.f32.gmra.mxu0 %v777
        %v779 = vpop.f32.mrf.mxu0
        %v780 = vadd.f32 %v750, %v779
        %v781 = vand.u32 %v266, 4294901760
        %v782 = vsub.f32 %v266, %v781
        %v783 = vand.u32 %v782, 4294901760
        %784 = vmatmul.f32.gmra.mxu0 %v783
        %v785 = vpop.f32.mrf.mxu0
        %v786 = vadd.f32 %v755, %v785
        %787 = vdwg.mxu0
        %788 = vmatpush.msra.mxu0 0.0
        %789 = vmatpush.msra.mxu0 0.0
        %790 = vmatpush.msra.mxu0 0.0
        %791 = vmatpush.msra.mxu0 0.0
        %792 = vmatpush.msra.mxu0 0.0
        %793 = vmatpush.msra.mxu0 0.0
        %794 = vmatpush.msra.mxu0 0.0
        %795 = vmatpush.msra.mxu0 0.0
        %796 = vmatpush.msra.mxu0 0.0
        %797 = vmatpush.msra.mxu0 0.0
        %798 = vmatpush.msra.mxu0 0.0
        %799 = vmatpush.msra.mxu0 0.0
        %800 = vmatpush.msra.mxu0 0.0
        %801 = vmatpush.msra.mxu0 0.0
        %v802 = vand.u32 %v232, 4294901760
        %v803 = vsub.f32 %v232, %v802
        %v804 = vand.u32 %v803, 4294901760
        %805 = vmatpush.msra.mxu0 %v804
        %v806 = vand.u32 %v231, 4294901760
        %v807 = vsub.f32 %v231, %v806
        %v808 = vand.u32 %v807, 4294901760
        %809 = vmatpush.msra.mxu0 %v808
        %v810 = vand.u32 %v263, 4294901760
        %811 = vmatmul.f32.gmra.mxu0 %v810
        %v812 = vpop.f32.mrf.mxu0
        %v813 = vadd.f32 %v780, %v812
        %v814 = vand.u32 %v266, 4294901760
        %815 = vmatmul.f32.gmra.mxu0 %v814
        %v816 = vpop.f32.mrf.mxu0
        %v817 = vadd.f32 %v786, %v816
        %818 = vdwg.mxu0
        %819 = vmatpush.msra.mxu0 0.0
        %820 = vmatpush.msra.mxu0 0.0
        %821 = vmatpush.msra.mxu0 0.0
        %822 = vmatpush.msra.mxu0 0.0
        %823 = vmatpush.msra.mxu0 0.0
        %824 = vmatpush.msra.mxu0 0.0
        %825 = vmatpush.msra.mxu0 0.0
        %826 = vmatpush.msra.mxu0 0.0
        %827 = vmatpush.msra.mxu0 0.0
        %828 = vmatpush.msra.mxu0 0.0
        %829 = vmatpush.msra.mxu0 0.0
        %830 = vmatpush.msra.mxu0 0.0
        %831 = vmatpush.msra.mxu0 0.0
        %832 = vmatpush.msra.mxu0 0.0
        %v833 = vand.u32 %v232, 4294901760
        %834 = vmatpush.msra.mxu0 %v833
        %v835 = vand.u32 %v231, 4294901760
        %836 = vmatpush.msra.mxu0 %v835
        %v837 = vand.u32 %v263, 4294901760
        %838 = vmatmul.f32.gmra.mxu0 %v837
        %v839 = vpop.f32.mrf.mxu0
        %v840 = vadd.f32 %v813, %v839
        %v841 = vand.u32 %v266, 4294901760
        %842 = vmatmul.f32.gmra.mxu0 %v841
        %v843 = vpop.f32.mrf.mxu0
        %v844 = vadd.f32 %v817, %v843
        %845 = vdwg.mxu0
        %v847 = vsel %vm261, %v840, 0
        %v850 = vsel %vm261, %v844, 0
        %852 = vmatpush.msra.mxu0 0.0
        %853 = vmatpush.msra.mxu0 0.0
        %854 = vmatpush.msra.mxu0 0.0
        %855 = vmatpush.msra.mxu0 0.0
        %856 = vmatpush.msra.mxu0 0.0
        %857 = vmatpush.msra.mxu0 0.0
        %858 = vmatpush.msra.mxu0 0.0
        %859 = vmatpush.msra.mxu0 0.0
        %860 = vmatpush.msra.mxu0 0.0
        %861 = vmatpush.msra.mxu0 0.0
        %862 = vmatpush.msra.mxu0 0.0
        %863 = vmatpush.msra.mxu0 0.0
        %864 = vmatpush.msra.mxu0 0.0
        %865 = vmatpush.msra.mxu0 0.0
        %v866 = vand.u32 %v260, 4294901760
        %867 = vmatpush.msra.mxu0 %v866
        %v868 = vand.u32 %v259, 4294901760
        %869 = vmatpush.msra.mxu0 %v868
        %v870 = vand.u32 %v847, 4294901760
        %v871 = vsub.f32 %v847, %v870
        %v872 = vand.u32 %v871, 4294901760
        %v873 = vsub.f32 %v871, %v872
        %v874 = vand.u32 %v873, 4294901760
        %875 = vmatmul.f32.gmra.mxu0 %v874
        %v876 = vpop.f32.mrf.mxu0
        %v877 = vadd.f32 0.0, %v876
        %v878 = vand.u32 %v850, 4294901760
        %v879 = vsub.f32 %v850, %v878
        %v880 = vand.u32 %v879, 4294901760
        %v881 = vsub.f32 %v879, %v880
        %v882 = vand.u32 %v881, 4294901760
        %883 = vmatmul.f32.gmra.mxu0 %v882
        %v884 = vpop.f32.mrf.mxu0
        %v885 = vadd.f32 0.0, %v884
        %886 = vdwg.mxu0
        %887 = vmatpush.msra.mxu0 0.0
        %888 = vmatpush.msra.mxu0 0.0
        %889 = vmatpush.msra.mxu0 0.0
        %890 = vmatpush.msra.mxu0 0.0
        %891 = vmatpush.msra.mxu0 0.0
        %892 = vmatpush.msra.mxu0 0.0
        %893 = vmatpush.msra.mxu0 0.0
        %894 = vmatpush.msra.mxu0 0.0
        %895 = vmatpush.msra.mxu0 0.0
        %896 = vmatpush.msra.mxu0 0.0
        %897 = vmatpush.msra.mxu0 0.0
        %898 = vmatpush.msra.mxu0 0.0
        %899 = vmatpush.msra.mxu0 0.0
        %900 = vmatpush.msra.mxu0 0.0
        %v901 = vand.u32 %v260, 4294901760
        %v902 = vsub.f32 %v260, %v901
        %v903 = vand.u32 %v902, 4294901760
        %v904 = vsub.f32 %v902, %v903
        %v905 = vand.u32 %v904, 4294901760
        %906 = vmatpush.msra.mxu0 %v905
        %v907 = vand.u32 %v259, 4294901760
        %v908 = vsub.f32 %v259, %v907
        %v909 = vand.u32 %v908, 4294901760
        %v910 = vsub.f32 %v908, %v909
        %v911 = vand.u32 %v910, 4294901760
        %912 = vmatpush.msra.mxu0 %v911
        %v913 = vand.u32 %v847, 4294901760
        %914 = vmatmul.f32.gmra.mxu0 %v913
        %v915 = vpop.f32.mrf.mxu0
        %v916 = vadd.f32 %v877, %v915
        %v917 = vand.u32 %v850, 4294901760
        %918 = vmatmul.f32.gmra.mxu0 %v917
        %v919 = vpop.f32.mrf.mxu0
        %v920 = vadd.f32 %v885, %v919
        %921 = vdwg.mxu0
        %922 = vmatpush.msra.mxu0 0.0
        %923 = vmatpush.msra.mxu0 0.0
        %924 = vmatpush.msra.mxu0 0.0
        %925 = vmatpush.msra.mxu0 0.0
        %926 = vmatpush.msra.mxu0 0.0
        %927 = vmatpush.msra.mxu0 0.0
        %928 = vmatpush.msra.mxu0 0.0
        %929 = vmatpush.msra.mxu0 0.0
        %930 = vmatpush.msra.mxu0 0.0
        %931 = vmatpush.msra.mxu0 0.0
        %932 = vmatpush.msra.mxu0 0.0
        %933 = vmatpush.msra.mxu0 0.0
        %934 = vmatpush.msra.mxu0 0.0
        %935 = vmatpush.msra.mxu0 0.0
        %v936 = vand.u32 %v260, 4294901760
        %v937 = vsub.f32 %v260, %v936
        %938 = vmatpush.msra.mxu0 %v937
        %v939 = vand.u32 %v259, 4294901760
        %v940 = vsub.f32 %v259, %v939
        %941 = vmatpush.msra.mxu0 %v940
        %v942 = vand.u32 %v847, 4294901760
        %v943 = vsub.f32 %v847, %v942
        %944 = vmatmul.f32.gmra.mxu0 %v943
        %v945 = vpop.f32.mrf.mxu0
        %v946 = vadd.f32 %v916, %v945
        %v947 = vand.u32 %v850, 4294901760
        %v948 = vsub.f32 %v850, %v947
        %949 = vmatmul.f32.gmra.mxu0 %v948
        %v950 = vpop.f32.mrf.mxu0
        %v951 = vadd.f32 %v920, %v950
        %952 = vdwg.mxu0
        %953 = vmatpush.msra.mxu0 0.0
        %954 = vmatpush.msra.mxu0 0.0
        %955 = vmatpush.msra.mxu0 0.0
        %956 = vmatpush.msra.mxu0 0.0
        %957 = vmatpush.msra.mxu0 0.0
        %958 = vmatpush.msra.mxu0 0.0
        %959 = vmatpush.msra.mxu0 0.0
        %960 = vmatpush.msra.mxu0 0.0
        %961 = vmatpush.msra.mxu0 0.0
        %962 = vmatpush.msra.mxu0 0.0
        %963 = vmatpush.msra.mxu0 0.0
        %964 = vmatpush.msra.mxu0 0.0
        %965 = vmatpush.msra.mxu0 0.0
        %966 = vmatpush.msra.mxu0 0.0
        %v967 = vand.u32 %v260, 4294901760
        %968 = vmatpush.msra.mxu0 %v967
        %v969 = vand.u32 %v259, 4294901760
        %970 = vmatpush.msra.mxu0 %v969
        %v971 = vand.u32 %v847, 4294901760
        %v972 = vsub.f32 %v847, %v971
        %v973 = vand.u32 %v972, 4294901760
        %974 = vmatmul.f32.gmra.mxu0 %v973
        %v975 = vpop.f32.mrf.mxu0
        %v976 = vadd.f32 %v946, %v975
        %v977 = vand.u32 %v850, 4294901760
        %v978 = vsub.f32 %v850, %v977
        %v979 = vand.u32 %v978, 4294901760
        %980 = vmatmul.f32.gmra.mxu0 %v979
        %v981 = vpop.f32.mrf.mxu0
        %v982 = vadd.f32 %v951, %v981
        %983 = vdwg.mxu0
        %984 = vmatpush.msra.mxu0 0.0
        %985 = vmatpush.msra.mxu0 0.0
        %986 = vmatpush.msra.mxu0 0.0
        %987 = vmatpush.msra.mxu0 0.0
        %988 = vmatpush.msra.mxu0 0.0
        %989 = vmatpush.msra.mxu0 0.0
        %990 = vmatpush.msra.mxu0 0.0
        %991 = vmatpush.msra.mxu0 0.0
        %992 = vmatpush.msra.mxu0 0.0
        %993 = vmatpush.msra.mxu0 0.0
        %994 = vmatpush.msra.mxu0 0.0
        %995 = vmatpush.msra.mxu0 0.0
        %996 = vmatpush.msra.mxu0 0.0
        %997 = vmatpush.msra.mxu0 0.0
        %v998 = vand.u32 %v260, 4294901760
        %v999 = vsub.f32 %v260, %v998
        %v1000 = vand.u32 %v999, 4294901760
        %1001 = vmatpush.msra.mxu0 %v1000
        %v1002 = vand.u32 %v259, 4294901760
        %v1003 = vsub.f32 %v259, %v1002
        %v1004 = vand.u32 %v1003, 4294901760
        %1005 = vmatpush.msra.mxu0 %v1004
        %v1006 = vand.u32 %v847, 4294901760
        %1007 = vmatmul.f32.gmra.mxu0 %v1006
        %v1008 = vpop.f32.mrf.mxu0
        %v1009 = vadd.f32 %v976, %v1008
        %v1010 = vand.u32 %v850, 4294901760
        %1011 = vmatmul.f32.gmra.mxu0 %v1010
        %v1012 = vpop.f32.mrf.mxu0
        %v1013 = vadd.f32 %v982, %v1012
        %1014 = vdwg.mxu0
        %1015 = vmatpush.msra.mxu0 0.0
        %1016 = vmatpush.msra.mxu0 0.0
        %1017 = vmatpush.msra.mxu0 0.0
        %1018 = vmatpush.msra.mxu0 0.0
        %1019 = vmatpush.msra.mxu0 0.0
        %1020 = vmatpush.msra.mxu0 0.0
        %1021 = vmatpush.msra.mxu0 0.0
        %1022 = vmatpush.msra.mxu0 0.0
        %1023 = vmatpush.msra.mxu0 0.0
        %1024 = vmatpush.msra.mxu0 0.0
        %1025 = vmatpush.msra.mxu0 0.0
        %1026 = vmatpush.msra.mxu0 0.0
        %1027 = vmatpush.msra.mxu0 0.0
        %1028 = vmatpush.msra.mxu0 0.0
        %v1029 = vand.u32 %v260, 4294901760
        %1030 = vmatpush.msra.mxu0 %v1029
        %v1031 = vand.u32 %v259, 4294901760
        %1032 = vmatpush.msra.mxu0 %v1031
        %v1033 = vand.u32 %v847, 4294901760
        %1034 = vmatmul.f32.gmra.mxu0 %v1033
        %v1035 = vpop.f32.mrf.mxu0
        %v1036 = vadd.f32 %v1009, %v1035
        %v1037 = vand.u32 %v850, 4294901760
        %1038 = vmatmul.f32.gmra.mxu0 %v1037
        %v1039 = vpop.f32.mrf.mxu0
        %v1040 = vadd.f32 %v1013, %v1039
        %1041 = vdwg.mxu0
        %v1042 = vmul.f32 %v1036, 0.020408163
        %v1043 = vmul.f32 %v1040, 0.020408163
        %v1044 = vmul.f32 %v229, %v229
        %v1045 = vmul.f32 %v230, %v230
        %1046 = vmatpush.msra.mxu0 0.0
        %1047 = vmatpush.msra.mxu0 0.0
        %1048 = vmatpush.msra.mxu0 0.0
        %1049 = vmatpush.msra.mxu0 0.0
        %1050 = vmatpush.msra.mxu0 0.0
        %1051 = vmatpush.msra.mxu0 0.0
        %1052 = vmatpush.msra.mxu0 0.0
        %1053 = vmatpush.msra.mxu0 0.0
        %1054 = vmatpush.msra.mxu0 0.0
        %1055 = vmatpush.msra.mxu0 0.0
        %1056 = vmatpush.msra.mxu0 0.0
        %1057 = vmatpush.msra.mxu0 0.0
        %1058 = vmatpush.msra.mxu0 0.0
        %1059 = vmatpush.msra.mxu0 0.0
        %v1060 = vand.u32 %v1045, 4294901760
        %1061 = vmatpush.msra.mxu0 %v1060
        %v1062 = vand.u32 %v1044, 4294901760
        %1063 = vmatpush.msra.mxu0 %v1062
        %v1064 = vand.u32 %v263, 4294901760
        %v1065 = vsub.f32 %v263, %v1064
        %v1066 = vand.u32 %v1065, 4294901760
        %v1067 = vsub.f32 %v1065, %v1066
        %v1068 = vand.u32 %v1067, 4294901760
        %1069 = vmatmul.f32.gmra.mxu0 %v1068
        %v1070 = vpop.f32.mrf.mxu0
        %v1071 = vadd.f32 0.0, %v1070
        %v1072 = vand.u32 %v266, 4294901760
        %v1073 = vsub.f32 %v266, %v1072
        %v1074 = vand.u32 %v1073, 4294901760
        %v1075 = vsub.f32 %v1073, %v1074
        %v1076 = vand.u32 %v1075, 4294901760
        %1077 = vmatmul.f32.gmra.mxu0 %v1076
        %v1078 = vpop.f32.mrf.mxu0
        %v1079 = vadd.f32 0.0, %v1078
        %1080 = vdwg.mxu0
        %1081 = vmatpush.msra.mxu0 0.0
        %1082 = vmatpush.msra.mxu0 0.0
        %1083 = vmatpush.msra.mxu0 0.0
        %1084 = vmatpush.msra.mxu0 0.0
        %1085 = vmatpush.msra.mxu0 0.0
        %1086 = vmatpush.msra.mxu0 0.0
        %1087 = vmatpush.msra.mxu0 0.0
        %1088 = vmatpush.msra.mxu0 0.0
        %1089 = vmatpush.msra.mxu0 0.0
        %1090 = vmatpush.msra.mxu0 0.0
        %1091 = vmatpush.msra.mxu0 0.0
        %1092 = vmatpush.msra.mxu0 0.0
        %1093 = vmatpush.msra.mxu0 0.0
        %1094 = vmatpush.msra.mxu0 0.0
        %v1095 = vand.u32 %v1045, 4294901760
        %v1096 = vsub.f32 %v1045, %v1095
        %v1097 = vand.u32 %v1096, 4294901760
        %v1098 = vsub.f32 %v1096, %v1097
        %v1099 = vand.u32 %v1098, 4294901760
        %1100 = vmatpush.msra.mxu0 %v1099
        %v1101 = vand.u32 %v1044, 4294901760
        %v1102 = vsub.f32 %v1044, %v1101
        %v1103 = vand.u32 %v1102, 4294901760
        %v1104 = vsub.f32 %v1102, %v1103
        %v1105 = vand.u32 %v1104, 4294901760
        %1106 = vmatpush.msra.mxu0 %v1105
        %v1107 = vand.u32 %v263, 4294901760
        %1108 = vmatmul.f32.gmra.mxu0 %v1107
        %v1109 = vpop.f32.mrf.mxu0
        %v1110 = vadd.f32 %v1071, %v1109
        %v1111 = vand.u32 %v266, 4294901760
        %1112 = vmatmul.f32.gmra.mxu0 %v1111
        %v1113 = vpop.f32.mrf.mxu0
        %v1114 = vadd.f32 %v1079, %v1113
        %1115 = vdwg.mxu0
        %1116 = vmatpush.msra.mxu0 0.0
        %1117 = vmatpush.msra.mxu0 0.0
        %1118 = vmatpush.msra.mxu0 0.0
        %1119 = vmatpush.msra.mxu0 0.0
        %1120 = vmatpush.msra.mxu0 0.0
        %1121 = vmatpush.msra.mxu0 0.0
        %1122 = vmatpush.msra.mxu0 0.0
        %1123 = vmatpush.msra.mxu0 0.0
        %1124 = vmatpush.msra.mxu0 0.0
        %1125 = vmatpush.msra.mxu0 0.0
        %1126 = vmatpush.msra.mxu0 0.0
        %1127 = vmatpush.msra.mxu0 0.0
        %1128 = vmatpush.msra.mxu0 0.0
        %1129 = vmatpush.msra.mxu0 0.0
        %v1130 = vand.u32 %v1045, 4294901760
        %v1131 = vsub.f32 %v1045, %v1130
        %1132 = vmatpush.msra.mxu0 %v1131
        %v1133 = vand.u32 %v1044, 4294901760
        %v1134 = vsub.f32 %v1044, %v1133
        %1135 = vmatpush.msra.mxu0 %v1134
        %v1136 = vand.u32 %v263, 4294901760
        %v1137 = vsub.f32 %v263, %v1136
        %1138 = vmatmul.f32.gmra.mxu0 %v1137
        %v1139 = vpop.f32.mrf.mxu0
        %v1140 = vadd.f32 %v1110, %v1139
        %v1141 = vand.u32 %v266, 4294901760
        %v1142 = vsub.f32 %v266, %v1141
        %1143 = vmatmul.f32.gmra.mxu0 %v1142
        %v1144 = vpop.f32.mrf.mxu0
        %v1145 = vadd.f32 %v1114, %v1144
        %1146 = vdwg.mxu0
        %1147 = vmatpush.msra.mxu0 0.0
        %1148 = vmatpush.msra.mxu0 0.0
        %1149 = vmatpush.msra.mxu0 0.0
        %1150 = vmatpush.msra.mxu0 0.0
        %1151 = vmatpush.msra.mxu0 0.0
        %1152 = vmatpush.msra.mxu0 0.0
        %1153 = vmatpush.msra.mxu0 0.0
        %1154 = vmatpush.msra.mxu0 0.0
        %1155 = vmatpush.msra.mxu0 0.0
        %1156 = vmatpush.msra.mxu0 0.0
        %1157 = vmatpush.msra.mxu0 0.0
        %1158 = vmatpush.msra.mxu0 0.0
        %1159 = vmatpush.msra.mxu0 0.0
        %1160 = vmatpush.msra.mxu0 0.0
        %v1161 = vand.u32 %v1045, 4294901760
        %1162 = vmatpush.msra.mxu0 %v1161
        %v1163 = vand.u32 %v1044, 4294901760
        %1164 = vmatpush.msra.mxu0 %v1163
        %v1165 = vand.u32 %v263, 4294901760
        %v1166 = vsub.f32 %v263, %v1165
        %v1167 = vand.u32 %v1166, 4294901760
        %1168 = vmatmul.f32.gmra.mxu0 %v1167
        %v1169 = vpop.f32.mrf.mxu0
        %v1170 = vadd.f32 %v1140, %v1169
        %v1171 = vand.u32 %v266, 4294901760
        %v1172 = vsub.f32 %v266, %v1171
        %v1173 = vand.u32 %v1172, 4294901760
        %1174 = vmatmul.f32.gmra.mxu0 %v1173
        %v1175 = vpop.f32.mrf.mxu0
        %v1176 = vadd.f32 %v1145, %v1175
        %1177 = vdwg.mxu0
        %1178 = vmatpush.msra.mxu0 0.0
        %1179 = vmatpush.msra.mxu0 0.0
        %1180 = vmatpush.msra.mxu0 0.0
        %1181 = vmatpush.msra.mxu0 0.0
        %1182 = vmatpush.msra.mxu0 0.0
        %1183 = vmatpush.msra.mxu0 0.0
        %1184 = vmatpush.msra.mxu0 0.0
        %1185 = vmatpush.msra.mxu0 0.0
        %1186 = vmatpush.msra.mxu0 0.0
        %1187 = vmatpush.msra.mxu0 0.0
        %1188 = vmatpush.msra.mxu0 0.0
        %1189 = vmatpush.msra.mxu0 0.0
        %1190 = vmatpush.msra.mxu0 0.0
        %1191 = vmatpush.msra.mxu0 0.0
        %v1192 = vand.u32 %v1045, 4294901760
        %v1193 = vsub.f32 %v1045, %v1192
        %v1194 = vand.u32 %v1193, 4294901760
        %1195 = vmatpush.msra.mxu0 %v1194
        %v1196 = vand.u32 %v1044, 4294901760
        %v1197 = vsub.f32 %v1044, %v1196
        %v1198 = vand.u32 %v1197, 4294901760
        %1199 = vmatpush.msra.mxu0 %v1198
        %v1200 = vand.u32 %v263, 4294901760
        %1201 = vmatmul.f32.gmra.mxu0 %v1200
        %v1202 = vpop.f32.mrf.mxu0
        %v1203 = vadd.f32 %v1170, %v1202
        %v1204 = vand.u32 %v266, 4294901760
        %1205 = vmatmul.f32.gmra.mxu0 %v1204
        %v1206 = vpop.f32.mrf.mxu0
        %v1207 = vadd.f32 %v1176, %v1206
        %1208 = vdwg.mxu0
        %1209 = vmatpush.msra.mxu0 0.0
        %1210 = vmatpush.msra.mxu0 0.0
        %1211 = vmatpush.msra.mxu0 0.0
        %1212 = vmatpush.msra.mxu0 0.0
        %1213 = vmatpush.msra.mxu0 0.0
        %1214 = vmatpush.msra.mxu0 0.0
        %1215 = vmatpush.msra.mxu0 0.0
        %1216 = vmatpush.msra.mxu0 0.0
        %1217 = vmatpush.msra.mxu0 0.0
        %1218 = vmatpush.msra.mxu0 0.0
        %1219 = vmatpush.msra.mxu0 0.0
        %1220 = vmatpush.msra.mxu0 0.0
        %1221 = vmatpush.msra.mxu0 0.0
        %1222 = vmatpush.msra.mxu0 0.0
        %v1223 = vand.u32 %v1045, 4294901760
        %1224 = vmatpush.msra.mxu0 %v1223
        %v1225 = vand.u32 %v1044, 4294901760
        %1226 = vmatpush.msra.mxu0 %v1225
        %v1227 = vand.u32 %v263, 4294901760
        %1228 = vmatmul.f32.gmra.mxu0 %v1227
        %v1229 = vpop.f32.mrf.mxu0
        %v1230 = vadd.f32 %v1203, %v1229
        %v1231 = vand.u32 %v266, 4294901760
        %1232 = vmatmul.f32.gmra.mxu0 %v1231
        %v1233 = vpop.f32.mrf.mxu0
        %v1234 = vadd.f32 %v1207, %v1233
        %1235 = vdwg.mxu0
        %v1237 = vsel %vm261, %v1230, 0
        %v1240 = vsel %vm261, %v1234, 0
        %1242 = vmatpush.msra.mxu0 0.0
        %1243 = vmatpush.msra.mxu0 0.0
        %1244 = vmatpush.msra.mxu0 0.0
        %1245 = vmatpush.msra.mxu0 0.0
        %1246 = vmatpush.msra.mxu0 0.0
        %1247 = vmatpush.msra.mxu0 0.0
        %1248 = vmatpush.msra.mxu0 0.0
        %1249 = vmatpush.msra.mxu0 0.0
        %1250 = vmatpush.msra.mxu0 0.0
        %1251 = vmatpush.msra.mxu0 0.0
        %1252 = vmatpush.msra.mxu0 0.0
        %1253 = vmatpush.msra.mxu0 0.0
        %1254 = vmatpush.msra.mxu0 0.0
        %1255 = vmatpush.msra.mxu0 0.0
        %v1256 = vand.u32 %v260, 4294901760
        %1257 = vmatpush.msra.mxu0 %v1256
        %v1258 = vand.u32 %v259, 4294901760
        %1259 = vmatpush.msra.mxu0 %v1258
        %v1260 = vand.u32 %v1237, 4294901760
        %v1261 = vsub.f32 %v1237, %v1260
        %v1262 = vand.u32 %v1261, 4294901760
        %v1263 = vsub.f32 %v1261, %v1262
        %v1264 = vand.u32 %v1263, 4294901760
        %1265 = vmatmul.f32.gmra.mxu0 %v1264
        %v1266 = vpop.f32.mrf.mxu0
        %v1267 = vadd.f32 0.0, %v1266
        %v1268 = vand.u32 %v1240, 4294901760
        %v1269 = vsub.f32 %v1240, %v1268
        %v1270 = vand.u32 %v1269, 4294901760
        %v1271 = vsub.f32 %v1269, %v1270
        %v1272 = vand.u32 %v1271, 4294901760
        %1273 = vmatmul.f32.gmra.mxu0 %v1272
        %v1274 = vpop.f32.mrf.mxu0
        %v1275 = vadd.f32 0.0, %v1274
        %1276 = vdwg.mxu0
        %1277 = vmatpush.msra.mxu0 0.0
        %1278 = vmatpush.msra.mxu0 0.0
        %1279 = vmatpush.msra.mxu0 0.0
        %1280 = vmatpush.msra.mxu0 0.0
        %1281 = vmatpush.msra.mxu0 0.0
        %1282 = vmatpush.msra.mxu0 0.0
        %1283 = vmatpush.msra.mxu0 0.0
        %1284 = vmatpush.msra.mxu0 0.0
        %1285 = vmatpush.msra.mxu0 0.0
        %1286 = vmatpush.msra.mxu0 0.0
        %1287 = vmatpush.msra.mxu0 0.0
        %1288 = vmatpush.msra.mxu0 0.0
        %1289 = vmatpush.msra.mxu0 0.0
        %1290 = vmatpush.msra.mxu0 0.0
        %v1291 = vand.u32 %v260, 4294901760
        %v1292 = vsub.f32 %v260, %v1291
        %v1293 = vand.u32 %v1292, 4294901760
        %v1294 = vsub.f32 %v1292, %v1293
        %v1295 = vand.u32 %v1294, 4294901760
        %1296 = vmatpush.msra.mxu0 %v1295
        %v1297 = vand.u32 %v259, 4294901760
        %v1298 = vsub.f32 %v259, %v1297
        %v1299 = vand.u32 %v1298, 4294901760
        %v1300 = vsub.f32 %v1298, %v1299
        %v1301 = vand.u32 %v1300, 4294901760
        %1302 = vmatpush.msra.mxu0 %v1301
        %v1303 = vand.u32 %v1237, 4294901760
        %1304 = vmatmul.f32.gmra.mxu0 %v1303
        %v1305 = vpop.f32.mrf.mxu0
        %v1306 = vadd.f32 %v1267, %v1305
        %v1307 = vand.u32 %v1240, 4294901760
        %1308 = vmatmul.f32.gmra.mxu0 %v1307
        %v1309 = vpop.f32.mrf.mxu0
        %v1310 = vadd.f32 %v1275, %v1309
        %1311 = vdwg.mxu0
        %1312 = vmatpush.msra.mxu0 0.0
        %1313 = vmatpush.msra.mxu0 0.0
        %1314 = vmatpush.msra.mxu0 0.0
        %1315 = vmatpush.msra.mxu0 0.0
        %1316 = vmatpush.msra.mxu0 0.0
        %1317 = vmatpush.msra.mxu0 0.0
        %1318 = vmatpush.msra.mxu0 0.0
        %1319 = vmatpush.msra.mxu0 0.0
        %1320 = vmatpush.msra.mxu0 0.0
        %1321 = vmatpush.msra.mxu0 0.0
        %1322 = vmatpush.msra.mxu0 0.0
        %1323 = vmatpush.msra.mxu0 0.0
        %1324 = vmatpush.msra.mxu0 0.0
        %1325 = vmatpush.msra.mxu0 0.0
        %v1326 = vand.u32 %v260, 4294901760
        %v1327 = vsub.f32 %v260, %v1326
        %1328 = vmatpush.msra.mxu0 %v1327
        %v1329 = vand.u32 %v259, 4294901760
        %v1330 = vsub.f32 %v259, %v1329
        %1331 = vmatpush.msra.mxu0 %v1330
        %v1332 = vand.u32 %v1237, 4294901760
        %v1333 = vsub.f32 %v1237, %v1332
        %1334 = vmatmul.f32.gmra.mxu0 %v1333
        %v1335 = vpop.f32.mrf.mxu0
        %v1336 = vadd.f32 %v1306, %v1335
        %v1337 = vand.u32 %v1240, 4294901760
        %v1338 = vsub.f32 %v1240, %v1337
        %1339 = vmatmul.f32.gmra.mxu0 %v1338
        %v1340 = vpop.f32.mrf.mxu0
        %v1341 = vadd.f32 %v1310, %v1340
        %1342 = vdwg.mxu0
        %1343 = vmatpush.msra.mxu0 0.0
        %1344 = vmatpush.msra.mxu0 0.0
        %1345 = vmatpush.msra.mxu0 0.0
        %1346 = vmatpush.msra.mxu0 0.0
        %1347 = vmatpush.msra.mxu0 0.0
        %1348 = vmatpush.msra.mxu0 0.0
        %1349 = vmatpush.msra.mxu0 0.0
        %1350 = vmatpush.msra.mxu0 0.0
        %1351 = vmatpush.msra.mxu0 0.0
        %1352 = vmatpush.msra.mxu0 0.0
        %1353 = vmatpush.msra.mxu0 0.0
        %1354 = vmatpush.msra.mxu0 0.0
        %1355 = vmatpush.msra.mxu0 0.0
        %1356 = vmatpush.msra.mxu0 0.0
        %v1357 = vand.u32 %v260, 4294901760
        %1358 = vmatpush.msra.mxu0 %v1357
        %v1359 = vand.u32 %v259, 4294901760
        %1360 = vmatpush.msra.mxu0 %v1359
        %v1361 = vand.u32 %v1237, 4294901760
        %v1362 = vsub.f32 %v1237, %v1361
        %v1363 = vand.u32 %v1362, 4294901760
        %1364 = vmatmul.f32.gmra.mxu0 %v1363
        %v1365 = vpop.f32.mrf.mxu0
        %v1366 = vadd.f32 %v1336, %v1365
        %v1367 = vand.u32 %v1240, 4294901760
        %v1368 = vsub.f32 %v1240, %v1367
        %v1369 = vand.u32 %v1368, 4294901760
        %1370 = vmatmul.f32.gmra.mxu0 %v1369
        %v1371 = vpop.f32.mrf.mxu0
        %v1372 = vadd.f32 %v1341, %v1371
        %1373 = vdwg.mxu0
        %1374 = vmatpush.msra.mxu0 0.0
        %1375 = vmatpush.msra.mxu0 0.0
        %1376 = vmatpush.msra.mxu0 0.0
        %1377 = vmatpush.msra.mxu0 0.0
        %1378 = vmatpush.msra.mxu0 0.0
        %1379 = vmatpush.msra.mxu0 0.0
        %1380 = vmatpush.msra.mxu0 0.0
        %1381 = vmatpush.msra.mxu0 0.0
        %1382 = vmatpush.msra.mxu0 0.0
        %1383 = vmatpush.msra.mxu0 0.0
        %1384 = vmatpush.msra.mxu0 0.0
        %1385 = vmatpush.msra.mxu0 0.0
        %1386 = vmatpush.msra.mxu0 0.0
        %1387 = vmatpush.msra.mxu0 0.0
        %v1388 = vand.u32 %v260, 4294901760
        %v1389 = vsub.f32 %v260, %v1388
        %v1390 = vand.u32 %v1389, 4294901760
        %1391 = vmatpush.msra.mxu0 %v1390
        %v1392 = vand.u32 %v259, 4294901760
        %v1393 = vsub.f32 %v259, %v1392
        %v1394 = vand.u32 %v1393, 4294901760
        %1395 = vmatpush.msra.mxu0 %v1394
        %v1396 = vand.u32 %v1237, 4294901760
        %1397 = vmatmul.f32.gmra.mxu0 %v1396
        %v1398 = vpop.f32.mrf.mxu0
        %v1399 = vadd.f32 %v1366, %v1398
        %v1400 = vand.u32 %v1240, 4294901760
        %1401 = vmatmul.f32.gmra.mxu0 %v1400
        %v1402 = vpop.f32.mrf.mxu0
        %v1403 = vadd.f32 %v1372, %v1402
        %1404 = vdwg.mxu0
        %1405 = vmatpush.msra.mxu0 0.0
        %1406 = vmatpush.msra.mxu0 0.0
        %1407 = vmatpush.msra.mxu0 0.0
        %1408 = vmatpush.msra.mxu0 0.0
        %1409 = vmatpush.msra.mxu0 0.0
        %1410 = vmatpush.msra.mxu0 0.0
        %1411 = vmatpush.msra.mxu0 0.0
        %1412 = vmatpush.msra.mxu0 0.0
        %1413 = vmatpush.msra.mxu0 0.0
        %1414 = vmatpush.msra.mxu0 0.0
        %1415 = vmatpush.msra.mxu0 0.0
        %1416 = vmatpush.msra.mxu0 0.0
        %1417 = vmatpush.msra.mxu0 0.0
        %1418 = vmatpush.msra.mxu0 0.0
        %v1419 = vand.u32 %v260, 4294901760
        %1420 = vmatpush.msra.mxu0 %v1419
        %v1421 = vand.u32 %v259, 4294901760
        %1422 = vmatpush.msra.mxu0 %v1421
        %v1423 = vand.u32 %v1237, 4294901760
        %1424 = vmatmul.f32.gmra.mxu0 %v1423
        %v1425 = vpop.f32.mrf.mxu0
        %v1426 = vadd.f32 %v1399, %v1425
        %v1427 = vand.u32 %v1240, 4294901760
        %1428 = vmatmul.f32.gmra.mxu0 %v1427
        %v1429 = vpop.f32.mrf.mxu0
        %v1430 = vadd.f32 %v1403, %v1429
        %1431 = vdwg.mxu0
        %v1432 = vmul.f32 %v1426, 0.020408163
        %v1433 = vmul.f32 %v1430, 0.020408163
        %v1434 = vmul.f32 %v654, %v654
        %v1435 = vmul.f32 %v655, %v655
        %v1436 = vsub.f32 %v1432, %v1434
        %v1437 = vsub.f32 %v1433, %v1435
        %v1438 = vmul.f32 %v1436, 1.0208334
        %v1439 = vmul.f32 %v1437, 1.0208334
        %v1440 = vmul.f32 %v231, %v231
        %v1441 = vmul.f32 %v232, %v232
        %1442 = vmatpush.msra.mxu0 0.0
        %1443 = vmatpush.msra.mxu0 0.0
        %1444 = vmatpush.msra.mxu0 0.0
        %1445 = vmatpush.msra.mxu0 0.0
        %1446 = vmatpush.msra.mxu0 0.0
        %1447 = vmatpush.msra.mxu0 0.0
        %1448 = vmatpush.msra.mxu0 0.0
        %1449 = vmatpush.msra.mxu0 0.0
        %1450 = vmatpush.msra.mxu0 0.0
        %1451 = vmatpush.msra.mxu0 0.0
        %1452 = vmatpush.msra.mxu0 0.0
        %1453 = vmatpush.msra.mxu0 0.0
        %1454 = vmatpush.msra.mxu0 0.0
        %1455 = vmatpush.msra.mxu0 0.0
        %v1456 = vand.u32 %v1441, 4294901760
        %1457 = vmatpush.msra.mxu0 %v1456
        %v1458 = vand.u32 %v1440, 4294901760
        %1459 = vmatpush.msra.mxu0 %v1458
        %v1460 = vand.u32 %v263, 4294901760
        %v1461 = vsub.f32 %v263, %v1460
        %v1462 = vand.u32 %v1461, 4294901760
        %v1463 = vsub.f32 %v1461, %v1462
        %v1464 = vand.u32 %v1463, 4294901760
        %1465 = vmatmul.f32.gmra.mxu0 %v1464
        %v1466 = vpop.f32.mrf.mxu0
        %v1467 = vadd.f32 0.0, %v1466
        %v1468 = vand.u32 %v266, 4294901760
        %v1469 = vsub.f32 %v266, %v1468
        %v1470 = vand.u32 %v1469, 4294901760
        %v1471 = vsub.f32 %v1469, %v1470
        %v1472 = vand.u32 %v1471, 4294901760
        %1473 = vmatmul.f32.gmra.mxu0 %v1472
        %v1474 = vpop.f32.mrf.mxu0
        %v1475 = vadd.f32 0.0, %v1474
        %1476 = vdwg.mxu0
        %1477 = vmatpush.msra.mxu0 0.0
        %1478 = vmatpush.msra.mxu0 0.0
        %1479 = vmatpush.msra.mxu0 0.0
        %1480 = vmatpush.msra.mxu0 0.0
        %1481 = vmatpush.msra.mxu0 0.0
        %1482 = vmatpush.msra.mxu0 0.0
        %1483 = vmatpush.msra.mxu0 0.0
        %1484 = vmatpush.msra.mxu0 0.0
        %1485 = vmatpush.msra.mxu0 0.0
        %1486 = vmatpush.msra.mxu0 0.0
        %1487 = vmatpush.msra.mxu0 0.0
        %1488 = vmatpush.msra.mxu0 0.0
        %1489 = vmatpush.msra.mxu0 0.0
        %1490 = vmatpush.msra.mxu0 0.0
        %v1491 = vand.u32 %v1441, 4294901760
        %v1492 = vsub.f32 %v1441, %v1491
        %v1493 = vand.u32 %v1492, 4294901760
        %v1494 = vsub.f32 %v1492, %v1493
        %v1495 = vand.u32 %v1494, 4294901760
        %1496 = vmatpush.msra.mxu0 %v1495
        %v1497 = vand.u32 %v1440, 4294901760
        %v1498 = vsub.f32 %v1440, %v1497
        %v1499 = vand.u32 %v1498, 4294901760
        %v1500 = vsub.f32 %v1498, %v1499
        %v1501 = vand.u32 %v1500, 4294901760
        %1502 = vmatpush.msra.mxu0 %v1501
        %v1503 = vand.u32 %v263, 4294901760
        %1504 = vmatmul.f32.gmra.mxu0 %v1503
        %v1505 = vpop.f32.mrf.mxu0
        %v1506 = vadd.f32 %v1467, %v1505
        %v1507 = vand.u32 %v266, 4294901760
        %1508 = vmatmul.f32.gmra.mxu0 %v1507
        %v1509 = vpop.f32.mrf.mxu0
        %v1510 = vadd.f32 %v1475, %v1509
        %1511 = vdwg.mxu0
        %1512 = vmatpush.msra.mxu0 0.0
        %1513 = vmatpush.msra.mxu0 0.0
        %1514 = vmatpush.msra.mxu0 0.0
        %1515 = vmatpush.msra.mxu0 0.0
        %1516 = vmatpush.msra.mxu0 0.0
        %1517 = vmatpush.msra.mxu0 0.0
        %1518 = vmatpush.msra.mxu0 0.0
        %1519 = vmatpush.msra.mxu0 0.0
        %1520 = vmatpush.msra.mxu0 0.0
        %1521 = vmatpush.msra.mxu0 0.0
        %1522 = vmatpush.msra.mxu0 0.0
        %1523 = vmatpush.msra.mxu0 0.0
        %1524 = vmatpush.msra.mxu0 0.0
        %1525 = vmatpush.msra.mxu0 0.0
        %v1526 = vand.u32 %v1441, 4294901760
        %v1527 = vsub.f32 %v1441, %v1526
        %1528 = vmatpush.msra.mxu0 %v1527
        %v1529 = vand.u32 %v1440, 4294901760
        %v1530 = vsub.f32 %v1440, %v1529
        %1531 = vmatpush.msra.mxu0 %v1530
        %v1532 = vand.u32 %v263, 4294901760
        %v1533 = vsub.f32 %v263, %v1532
        %1534 = vmatmul.f32.gmra.mxu0 %v1533
        %v1535 = vpop.f32.mrf.mxu0
        %v1536 = vadd.f32 %v1506, %v1535
        %v1537 = vand.u32 %v266, 4294901760
        %v1538 = vsub.f32 %v266, %v1537
        %1539 = vmatmul.f32.gmra.mxu0 %v1538
        %v1540 = vpop.f32.mrf.mxu0
        %v1541 = vadd.f32 %v1510, %v1540
        %1542 = vdwg.mxu0
        %1543 = vmatpush.msra.mxu0 0.0
        %1544 = vmatpush.msra.mxu0 0.0
        %1545 = vmatpush.msra.mxu0 0.0
        %1546 = vmatpush.msra.mxu0 0.0
        %1547 = vmatpush.msra.mxu0 0.0
        %1548 = vmatpush.msra.mxu0 0.0
        %1549 = vmatpush.msra.mxu0 0.0
        %1550 = vmatpush.msra.mxu0 0.0
        %1551 = vmatpush.msra.mxu0 0.0
        %1552 = vmatpush.msra.mxu0 0.0
        %1553 = vmatpush.msra.mxu0 0.0
        %1554 = vmatpush.msra.mxu0 0.0
        %1555 = vmatpush.msra.mxu0 0.0
        %1556 = vmatpush.msra.mxu0 0.0
        %v1557 = vand.u32 %v1441, 4294901760
        %1558 = vmatpush.msra.mxu0 %v1557
        %v1559 = vand.u32 %v1440, 4294901760
        %1560 = vmatpush.msra.mxu0 %v1559
        %v1561 = vand.u32 %v263, 4294901760
        %v1562 = vsub.f32 %v263, %v1561
        %v1563 = vand.u32 %v1562, 4294901760
        %1564 = vmatmul.f32.gmra.mxu0 %v1563
        %v1565 = vpop.f32.mrf.mxu0
        %v1566 = vadd.f32 %v1536, %v1565
        %v1567 = vand.u32 %v266, 4294901760
        %v1568 = vsub.f32 %v266, %v1567
        %v1569 = vand.u32 %v1568, 4294901760
        %1570 = vmatmul.f32.gmra.mxu0 %v1569
        %v1571 = vpop.f32.mrf.mxu0
        %v1572 = vadd.f32 %v1541, %v1571
        %1573 = vdwg.mxu0
        %1574 = vmatpush.msra.mxu0 0.0
        %1575 = vmatpush.msra.mxu0 0.0
        %1576 = vmatpush.msra.mxu0 0.0
        %1577 = vmatpush.msra.mxu0 0.0
        %1578 = vmatpush.msra.mxu0 0.0
        %1579 = vmatpush.msra.mxu0 0.0
        %1580 = vmatpush.msra.mxu0 0.0
        %1581 = vmatpush.msra.mxu0 0.0
        %1582 = vmatpush.msra.mxu0 0.0
        %1583 = vmatpush.msra.mxu0 0.0
        %1584 = vmatpush.msra.mxu0 0.0
        %1585 = vmatpush.msra.mxu0 0.0
        %1586 = vmatpush.msra.mxu0 0.0
        %1587 = vmatpush.msra.mxu0 0.0
        %v1588 = vand.u32 %v1441, 4294901760
        %v1589 = vsub.f32 %v1441, %v1588
        %v1590 = vand.u32 %v1589, 4294901760
        %1591 = vmatpush.msra.mxu0 %v1590
        %v1592 = vand.u32 %v1440, 4294901760
        %v1593 = vsub.f32 %v1440, %v1592
        %v1594 = vand.u32 %v1593, 4294901760
        %1595 = vmatpush.msra.mxu0 %v1594
        %v1596 = vand.u32 %v263, 4294901760
        %1597 = vmatmul.f32.gmra.mxu0 %v1596
        %v1598 = vpop.f32.mrf.mxu0
        %v1599 = vadd.f32 %v1566, %v1598
        %v1600 = vand.u32 %v266, 4294901760
        %1601 = vmatmul.f32.gmra.mxu0 %v1600
        %v1602 = vpop.f32.mrf.mxu0
        %v1603 = vadd.f32 %v1572, %v1602
        %1604 = vdwg.mxu0
        %1605 = vmatpush.msra.mxu0 0.0
        %1606 = vmatpush.msra.mxu0 0.0
        %1607 = vmatpush.msra.mxu0 0.0
        %1608 = vmatpush.msra.mxu0 0.0
        %1609 = vmatpush.msra.mxu0 0.0
        %1610 = vmatpush.msra.mxu0 0.0
        %1611 = vmatpush.msra.mxu0 0.0
        %1612 = vmatpush.msra.mxu0 0.0
        %1613 = vmatpush.msra.mxu0 0.0
        %1614 = vmatpush.msra.mxu0 0.0
        %1615 = vmatpush.msra.mxu0 0.0
        %1616 = vmatpush.msra.mxu0 0.0
        %1617 = vmatpush.msra.mxu0 0.0
        %1618 = vmatpush.msra.mxu0 0.0
        %v1619 = vand.u32 %v1441, 4294901760
        %1620 = vmatpush.msra.mxu0 %v1619
        %v1621 = vand.u32 %v1440, 4294901760
        %1622 = vmatpush.msra.mxu0 %v1621
        %v1623 = vand.u32 %v263, 4294901760
        %1624 = vmatmul.f32.gmra.mxu0 %v1623
        %v1625 = vpop.f32.mrf.mxu0
        %v1626 = vadd.f32 %v1599, %v1625
        %v1627 = vand.u32 %v266, 4294901760
        %1628 = vmatmul.f32.gmra.mxu0 %v1627
        %v1629 = vpop.f32.mrf.mxu0
        %v1630 = vadd.f32 %v1603, %v1629
        %1631 = vdwg.mxu0
        %v1633 = vsel %vm261, %v1626, 0
        %v1636 = vsel %vm261, %v1630, 0
        %1638 = vmatpush.msra.mxu0 0.0
        %1639 = vmatpush.msra.mxu0 0.0
        %1640 = vmatpush.msra.mxu0 0.0
        %1641 = vmatpush.msra.mxu0 0.0
        %1642 = vmatpush.msra.mxu0 0.0
        %1643 = vmatpush.msra.mxu0 0.0
        %1644 = vmatpush.msra.mxu0 0.0
        %1645 = vmatpush.msra.mxu0 0.0
        %1646 = vmatpush.msra.mxu0 0.0
        %1647 = vmatpush.msra.mxu0 0.0
        %1648 = vmatpush.msra.mxu0 0.0
        %1649 = vmatpush.msra.mxu0 0.0
        %1650 = vmatpush.msra.mxu0 0.0
        %1651 = vmatpush.msra.mxu0 0.0
        %v1652 = vand.u32 %v260, 4294901760
        %1653 = vmatpush.msra.mxu0 %v1652
        %v1654 = vand.u32 %v259, 4294901760
        %1655 = vmatpush.msra.mxu0 %v1654
        %v1656 = vand.u32 %v1633, 4294901760
        %v1657 = vsub.f32 %v1633, %v1656
        %v1658 = vand.u32 %v1657, 4294901760
        %v1659 = vsub.f32 %v1657, %v1658
        %v1660 = vand.u32 %v1659, 4294901760
        %1661 = vmatmul.f32.gmra.mxu0 %v1660
        %v1662 = vpop.f32.mrf.mxu0
        %v1663 = vadd.f32 0.0, %v1662
        %v1664 = vand.u32 %v1636, 4294901760
        %v1665 = vsub.f32 %v1636, %v1664
        %v1666 = vand.u32 %v1665, 4294901760
        %v1667 = vsub.f32 %v1665, %v1666
        %v1668 = vand.u32 %v1667, 4294901760
        %1669 = vmatmul.f32.gmra.mxu0 %v1668
        %v1670 = vpop.f32.mrf.mxu0
        %v1671 = vadd.f32 0.0, %v1670
        %1672 = vdwg.mxu0
        %1673 = vmatpush.msra.mxu0 0.0
        %1674 = vmatpush.msra.mxu0 0.0
        %1675 = vmatpush.msra.mxu0 0.0
        %1676 = vmatpush.msra.mxu0 0.0
        %1677 = vmatpush.msra.mxu0 0.0
        %1678 = vmatpush.msra.mxu0 0.0
        %1679 = vmatpush.msra.mxu0 0.0
        %1680 = vmatpush.msra.mxu0 0.0
        %1681 = vmatpush.msra.mxu0 0.0
        %1682 = vmatpush.msra.mxu0 0.0
        %1683 = vmatpush.msra.mxu0 0.0
        %1684 = vmatpush.msra.mxu0 0.0
        %1685 = vmatpush.msra.mxu0 0.0
        %1686 = vmatpush.msra.mxu0 0.0
        %v1687 = vand.u32 %v260, 4294901760
        %v1688 = vsub.f32 %v260, %v1687
        %v1689 = vand.u32 %v1688, 4294901760
        %v1690 = vsub.f32 %v1688, %v1689
        %v1691 = vand.u32 %v1690, 4294901760
        %1692 = vmatpush.msra.mxu0 %v1691
        %v1693 = vand.u32 %v259, 4294901760
        %v1694 = vsub.f32 %v259, %v1693
        %v1695 = vand.u32 %v1694, 4294901760
        %v1696 = vsub.f32 %v1694, %v1695
        %v1697 = vand.u32 %v1696, 4294901760
        %1698 = vmatpush.msra.mxu0 %v1697
        %v1699 = vand.u32 %v1633, 4294901760
        %1700 = vmatmul.f32.gmra.mxu0 %v1699
        %v1701 = vpop.f32.mrf.mxu0
        %v1702 = vadd.f32 %v1663, %v1701
        %v1703 = vand.u32 %v1636, 4294901760
        %1704 = vmatmul.f32.gmra.mxu0 %v1703
        %v1705 = vpop.f32.mrf.mxu0
        %v1706 = vadd.f32 %v1671, %v1705
        %1707 = vdwg.mxu0
        %1708 = vmatpush.msra.mxu0 0.0
        %1709 = vmatpush.msra.mxu0 0.0
        %1710 = vmatpush.msra.mxu0 0.0
        %1711 = vmatpush.msra.mxu0 0.0
        %1712 = vmatpush.msra.mxu0 0.0
        %1713 = vmatpush.msra.mxu0 0.0
        %1714 = vmatpush.msra.mxu0 0.0
        %1715 = vmatpush.msra.mxu0 0.0
        %1716 = vmatpush.msra.mxu0 0.0
        %1717 = vmatpush.msra.mxu0 0.0
        %1718 = vmatpush.msra.mxu0 0.0
        %1719 = vmatpush.msra.mxu0 0.0
        %1720 = vmatpush.msra.mxu0 0.0
        %1721 = vmatpush.msra.mxu0 0.0
        %v1722 = vand.u32 %v260, 4294901760
        %v1723 = vsub.f32 %v260, %v1722
        %1724 = vmatpush.msra.mxu0 %v1723
        %v1725 = vand.u32 %v259, 4294901760
        %v1726 = vsub.f32 %v259, %v1725
        %1727 = vmatpush.msra.mxu0 %v1726
        %v1728 = vand.u32 %v1633, 4294901760
        %v1729 = vsub.f32 %v1633, %v1728
        %1730 = vmatmul.f32.gmra.mxu0 %v1729
        %v1731 = vpop.f32.mrf.mxu0
        %v1732 = vadd.f32 %v1702, %v1731
        %v1733 = vand.u32 %v1636, 4294901760
        %v1734 = vsub.f32 %v1636, %v1733
        %1735 = vmatmul.f32.gmra.mxu0 %v1734
        %v1736 = vpop.f32.mrf.mxu0
        %v1737 = vadd.f32 %v1706, %v1736
        %1738 = vdwg.mxu0
        %1739 = vmatpush.msra.mxu0 0.0
        %1740 = vmatpush.msra.mxu0 0.0
        %1741 = vmatpush.msra.mxu0 0.0
        %1742 = vmatpush.msra.mxu0 0.0
        %1743 = vmatpush.msra.mxu0 0.0
        %1744 = vmatpush.msra.mxu0 0.0
        %1745 = vmatpush.msra.mxu0 0.0
        %1746 = vmatpush.msra.mxu0 0.0
        %1747 = vmatpush.msra.mxu0 0.0
        %1748 = vmatpush.msra.mxu0 0.0
        %1749 = vmatpush.msra.mxu0 0.0
        %1750 = vmatpush.msra.mxu0 0.0
        %1751 = vmatpush.msra.mxu0 0.0
        %1752 = vmatpush.msra.mxu0 0.0
        %v1753 = vand.u32 %v260, 4294901760
        %1754 = vmatpush.msra.mxu0 %v1753
        %v1755 = vand.u32 %v259, 4294901760
        %1756 = vmatpush.msra.mxu0 %v1755
        %v1757 = vand.u32 %v1633, 4294901760
        %v1758 = vsub.f32 %v1633, %v1757
        %v1759 = vand.u32 %v1758, 4294901760
        %1760 = vmatmul.f32.gmra.mxu0 %v1759
        %v1761 = vpop.f32.mrf.mxu0
        %v1762 = vadd.f32 %v1732, %v1761
        %v1763 = vand.u32 %v1636, 4294901760
        %v1764 = vsub.f32 %v1636, %v1763
        %v1765 = vand.u32 %v1764, 4294901760
        %1766 = vmatmul.f32.gmra.mxu0 %v1765
        %v1767 = vpop.f32.mrf.mxu0
        %v1768 = vadd.f32 %v1737, %v1767
        %1769 = vdwg.mxu0
        %1770 = vmatpush.msra.mxu0 0.0
        %1771 = vmatpush.msra.mxu0 0.0
        %1772 = vmatpush.msra.mxu0 0.0
        %1773 = vmatpush.msra.mxu0 0.0
        %1774 = vmatpush.msra.mxu0 0.0
        %1775 = vmatpush.msra.mxu0 0.0
        %1776 = vmatpush.msra.mxu0 0.0
        %1777 = vmatpush.msra.mxu0 0.0
        %1778 = vmatpush.msra.mxu0 0.0
        %1779 = vmatpush.msra.mxu0 0.0
        %1780 = vmatpush.msra.mxu0 0.0
        %1781 = vmatpush.msra.mxu0 0.0
        %1782 = vmatpush.msra.mxu0 0.0
        %1783 = vmatpush.msra.mxu0 0.0
        %v1784 = vand.u32 %v260, 4294901760
        %v1785 = vsub.f32 %v260, %v1784
        %v1786 = vand.u32 %v1785, 4294901760
        %1787 = vmatpush.msra.mxu0 %v1786
        %v1788 = vand.u32 %v259, 4294901760
        %v1789 = vsub.f32 %v259, %v1788
        %v1790 = vand.u32 %v1789, 4294901760
        %1791 = vmatpush.msra.mxu0 %v1790
        %v1792 = vand.u32 %v1633, 4294901760
        %1793 = vmatmul.f32.gmra.mxu0 %v1792
        %v1794 = vpop.f32.mrf.mxu0
        %v1795 = vadd.f32 %v1762, %v1794
        %v1796 = vand.u32 %v1636, 4294901760
        %1797 = vmatmul.f32.gmra.mxu0 %v1796
        %v1798 = vpop.f32.mrf.mxu0
        %v1799 = vadd.f32 %v1768, %v1798
        %1800 = vdwg.mxu0
        %1801 = vmatpush.msra.mxu0 0.0
        %1802 = vmatpush.msra.mxu0 0.0
        %1803 = vmatpush.msra.mxu0 0.0
        %1804 = vmatpush.msra.mxu0 0.0
        %1805 = vmatpush.msra.mxu0 0.0
        %1806 = vmatpush.msra.mxu0 0.0
        %1807 = vmatpush.msra.mxu0 0.0
        %1808 = vmatpush.msra.mxu0 0.0
        %1809 = vmatpush.msra.mxu0 0.0
        %1810 = vmatpush.msra.mxu0 0.0
        %1811 = vmatpush.msra.mxu0 0.0
        %1812 = vmatpush.msra.mxu0 0.0
        %1813 = vmatpush.msra.mxu0 0.0
        %1814 = vmatpush.msra.mxu0 0.0
        %v1815 = vand.u32 %v260, 4294901760
        %1816 = vmatpush.msra.mxu0 %v1815
        %v1817 = vand.u32 %v259, 4294901760
        %1818 = vmatpush.msra.mxu0 %v1817
        %v1819 = vand.u32 %v1633, 4294901760
        %1820 = vmatmul.f32.gmra.mxu0 %v1819
        %v1821 = vpop.f32.mrf.mxu0
        %v1822 = vadd.f32 %v1795, %v1821
        %v1823 = vand.u32 %v1636, 4294901760
        %1824 = vmatmul.f32.gmra.mxu0 %v1823
        %v1825 = vpop.f32.mrf.mxu0
        %v1826 = vadd.f32 %v1799, %v1825
        %1827 = vdwg.mxu0
        %v1828 = vmul.f32 %v1822, 0.020408163
        %v1829 = vmul.f32 %v1826, 0.020408163
        %v1830 = vmul.f32 %v1042, %v1042
        %v1831 = vmul.f32 %v1043, %v1043
        %v1832 = vsub.f32 %v1828, %v1830
        %v1833 = vsub.f32 %v1829, %v1831
        %v1834 = vmul.f32 %v1832, 1.0208334
        %v1835 = vmul.f32 %v1833, 1.0208334
        %v1836 = vmul.f32 %v229, %v231
        %v1837 = vmul.f32 %v230, %v232
        %1838 = vmatpush.msra.mxu0 0.0
        %1839 = vmatpush.msra.mxu0 0.0
        %1840 = vmatpush.msra.mxu0 0.0
        %1841 = vmatpush.msra.mxu0 0.0
        %1842 = vmatpush.msra.mxu0 0.0
        %1843 = vmatpush.msra.mxu0 0.0
        %1844 = vmatpush.msra.mxu0 0.0
        %1845 = vmatpush.msra.mxu0 0.0
        %1846 = vmatpush.msra.mxu0 0.0
        %1847 = vmatpush.msra.mxu0 0.0
        %1848 = vmatpush.msra.mxu0 0.0
        %1849 = vmatpush.msra.mxu0 0.0
        %1850 = vmatpush.msra.mxu0 0.0
        %1851 = vmatpush.msra.mxu0 0.0
        %v1852 = vand.u32 %v1837, 4294901760
        %1853 = vmatpush.msra.mxu0 %v1852
        %v1854 = vand.u32 %v1836, 4294901760
        %1855 = vmatpush.msra.mxu0 %v1854
        %v1856 = vand.u32 %v263, 4294901760
        %v1857 = vsub.f32 %v263, %v1856
        %v1858 = vand.u32 %v1857, 4294901760
        %v1859 = vsub.f32 %v1857, %v1858
        %v1860 = vand.u32 %v1859, 4294901760
        %1861 = vmatmul.f32.gmra.mxu0 %v1860
        %v1862 = vpop.f32.mrf.mxu0
        %v1863 = vadd.f32 0.0, %v1862
        %v1864 = vand.u32 %v266, 4294901760
        %v1865 = vsub.f32 %v266, %v1864
        %v1866 = vand.u32 %v1865, 4294901760
        %v1867 = vsub.f32 %v1865, %v1866
        %v1868 = vand.u32 %v1867, 4294901760
        %1869 = vmatmul.f32.gmra.mxu0 %v1868
        %v1870 = vpop.f32.mrf.mxu0
        %v1871 = vadd.f32 0.0, %v1870
        %1872 = vdwg.mxu0
        %1873 = vmatpush.msra.mxu0 0.0
        %1874 = vmatpush.msra.mxu0 0.0
        %1875 = vmatpush.msra.mxu0 0.0
        %1876 = vmatpush.msra.mxu0 0.0
        %1877 = vmatpush.msra.mxu0 0.0
        %1878 = vmatpush.msra.mxu0 0.0
        %1879 = vmatpush.msra.mxu0 0.0
        %1880 = vmatpush.msra.mxu0 0.0
        %1881 = vmatpush.msra.mxu0 0.0
        %1882 = vmatpush.msra.mxu0 0.0
        %1883 = vmatpush.msra.mxu0 0.0
        %1884 = vmatpush.msra.mxu0 0.0
        %1885 = vmatpush.msra.mxu0 0.0
        %1886 = vmatpush.msra.mxu0 0.0
        %v1887 = vand.u32 %v1837, 4294901760
        %v1888 = vsub.f32 %v1837, %v1887
        %v1889 = vand.u32 %v1888, 4294901760
        %v1890 = vsub.f32 %v1888, %v1889
        %v1891 = vand.u32 %v1890, 4294901760
        %1892 = vmatpush.msra.mxu0 %v1891
        %v1893 = vand.u32 %v1836, 4294901760
        %v1894 = vsub.f32 %v1836, %v1893
        %v1895 = vand.u32 %v1894, 4294901760
        %v1896 = vsub.f32 %v1894, %v1895
        %v1897 = vand.u32 %v1896, 4294901760
        %1898 = vmatpush.msra.mxu0 %v1897
        %v1899 = vand.u32 %v263, 4294901760
        %1900 = vmatmul.f32.gmra.mxu0 %v1899
        %v1901 = vpop.f32.mrf.mxu0
        %v1902 = vadd.f32 %v1863, %v1901
        %v1903 = vand.u32 %v266, 4294901760
        %1904 = vmatmul.f32.gmra.mxu0 %v1903
        %v1905 = vpop.f32.mrf.mxu0
        %v1906 = vadd.f32 %v1871, %v1905
        %1907 = vdwg.mxu0
        %1908 = vmatpush.msra.mxu0 0.0
        %1909 = vmatpush.msra.mxu0 0.0
        %1910 = vmatpush.msra.mxu0 0.0
        %1911 = vmatpush.msra.mxu0 0.0
        %1912 = vmatpush.msra.mxu0 0.0
        %1913 = vmatpush.msra.mxu0 0.0
        %1914 = vmatpush.msra.mxu0 0.0
        %1915 = vmatpush.msra.mxu0 0.0
        %1916 = vmatpush.msra.mxu0 0.0
        %1917 = vmatpush.msra.mxu0 0.0
        %1918 = vmatpush.msra.mxu0 0.0
        %1919 = vmatpush.msra.mxu0 0.0
        %1920 = vmatpush.msra.mxu0 0.0
        %1921 = vmatpush.msra.mxu0 0.0
        %v1922 = vand.u32 %v1837, 4294901760
        %v1923 = vsub.f32 %v1837, %v1922
        %1924 = vmatpush.msra.mxu0 %v1923
        %v1925 = vand.u32 %v1836, 4294901760
        %v1926 = vsub.f32 %v1836, %v1925
        %1927 = vmatpush.msra.mxu0 %v1926
        %v1928 = vand.u32 %v263, 4294901760
        %v1929 = vsub.f32 %v263, %v1928
        %1930 = vmatmul.f32.gmra.mxu0 %v1929
        %v1931 = vpop.f32.mrf.mxu0
        %v1932 = vadd.f32 %v1902, %v1931
        %v1933 = vand.u32 %v266, 4294901760
        %v1934 = vsub.f32 %v266, %v1933
        %1935 = vmatmul.f32.gmra.mxu0 %v1934
        %v1936 = vpop.f32.mrf.mxu0
        %v1937 = vadd.f32 %v1906, %v1936
        %1938 = vdwg.mxu0
        %1939 = vmatpush.msra.mxu0 0.0
        %1940 = vmatpush.msra.mxu0 0.0
        %1941 = vmatpush.msra.mxu0 0.0
        %1942 = vmatpush.msra.mxu0 0.0
        %1943 = vmatpush.msra.mxu0 0.0
        %1944 = vmatpush.msra.mxu0 0.0
        %1945 = vmatpush.msra.mxu0 0.0
        %1946 = vmatpush.msra.mxu0 0.0
        %1947 = vmatpush.msra.mxu0 0.0
        %1948 = vmatpush.msra.mxu0 0.0
        %1949 = vmatpush.msra.mxu0 0.0
        %1950 = vmatpush.msra.mxu0 0.0
        %1951 = vmatpush.msra.mxu0 0.0
        %1952 = vmatpush.msra.mxu0 0.0
        %v1953 = vand.u32 %v1837, 4294901760
        %1954 = vmatpush.msra.mxu0 %v1953
        %v1955 = vand.u32 %v1836, 4294901760
        %1956 = vmatpush.msra.mxu0 %v1955
        %v1957 = vand.u32 %v263, 4294901760
        %v1958 = vsub.f32 %v263, %v1957
        %v1959 = vand.u32 %v1958, 4294901760
        %1960 = vmatmul.f32.gmra.mxu0 %v1959
        %v1961 = vpop.f32.mrf.mxu0
        %v1962 = vadd.f32 %v1932, %v1961
        %v1963 = vand.u32 %v266, 4294901760
        %v1964 = vsub.f32 %v266, %v1963
        %v1965 = vand.u32 %v1964, 4294901760
        %1966 = vmatmul.f32.gmra.mxu0 %v1965
        %v1967 = vpop.f32.mrf.mxu0
        %v1968 = vadd.f32 %v1937, %v1967
        %1969 = vdwg.mxu0
        %1970 = vmatpush.msra.mxu0 0.0
        %1971 = vmatpush.msra.mxu0 0.0
        %1972 = vmatpush.msra.mxu0 0.0
        %1973 = vmatpush.msra.mxu0 0.0
        %1974 = vmatpush.msra.mxu0 0.0
        %1975 = vmatpush.msra.mxu0 0.0
        %1976 = vmatpush.msra.mxu0 0.0
        %1977 = vmatpush.msra.mxu0 0.0
        %1978 = vmatpush.msra.mxu0 0.0
        %1979 = vmatpush.msra.mxu0 0.0
        %1980 = vmatpush.msra.mxu0 0.0
        %1981 = vmatpush.msra.mxu0 0.0
        %1982 = vmatpush.msra.mxu0 0.0
        %1983 = vmatpush.msra.mxu0 0.0
        %v1984 = vand.u32 %v1837, 4294901760
        %v1985 = vsub.f32 %v1837, %v1984
        %v1986 = vand.u32 %v1985, 4294901760
        %1987 = vmatpush.msra.mxu0 %v1986
        %v1988 = vand.u32 %v1836, 4294901760
        %v1989 = vsub.f32 %v1836, %v1988
        %v1990 = vand.u32 %v1989, 4294901760
        %1991 = vmatpush.msra.mxu0 %v1990
        %v1992 = vand.u32 %v263, 4294901760
        %1993 = vmatmul.f32.gmra.mxu0 %v1992
        %v1994 = vpop.f32.mrf.mxu0
        %v1995 = vadd.f32 %v1962, %v1994
        %v1996 = vand.u32 %v266, 4294901760
        %1997 = vmatmul.f32.gmra.mxu0 %v1996
        %v1998 = vpop.f32.mrf.mxu0
        %v1999 = vadd.f32 %v1968, %v1998
        %2000 = vdwg.mxu0
        %2001 = vmatpush.msra.mxu0 0.0
        %2002 = vmatpush.msra.mxu0 0.0
        %2003 = vmatpush.msra.mxu0 0.0
        %2004 = vmatpush.msra.mxu0 0.0
        %2005 = vmatpush.msra.mxu0 0.0
        %2006 = vmatpush.msra.mxu0 0.0
        %2007 = vmatpush.msra.mxu0 0.0
        %2008 = vmatpush.msra.mxu0 0.0
        %2009 = vmatpush.msra.mxu0 0.0
        %2010 = vmatpush.msra.mxu0 0.0
        %2011 = vmatpush.msra.mxu0 0.0
        %2012 = vmatpush.msra.mxu0 0.0
        %2013 = vmatpush.msra.mxu0 0.0
        %2014 = vmatpush.msra.mxu0 0.0
        %v2015 = vand.u32 %v1837, 4294901760
        %2016 = vmatpush.msra.mxu0 %v2015
        %v2017 = vand.u32 %v1836, 4294901760
        %2018 = vmatpush.msra.mxu0 %v2017
        %v2019 = vand.u32 %v263, 4294901760
        %2020 = vmatmul.f32.gmra.mxu0 %v2019
        %v2021 = vpop.f32.mrf.mxu0
        %v2022 = vadd.f32 %v1995, %v2021
        %v2023 = vand.u32 %v266, 4294901760
        %2024 = vmatmul.f32.gmra.mxu0 %v2023
        %v2025 = vpop.f32.mrf.mxu0
        %v2026 = vadd.f32 %v1999, %v2025
        %2027 = vdwg.mxu0
        %v2029 = vsel %vm261, %v2022, 0
        %v2032 = vsel %vm261, %v2026, 0
        %2034 = vmatpush.msra.mxu0 0.0
        %2035 = vmatpush.msra.mxu0 0.0
        %2036 = vmatpush.msra.mxu0 0.0
        %2037 = vmatpush.msra.mxu0 0.0
        %2038 = vmatpush.msra.mxu0 0.0
        %2039 = vmatpush.msra.mxu0 0.0
        %2040 = vmatpush.msra.mxu0 0.0
        %2041 = vmatpush.msra.mxu0 0.0
        %2042 = vmatpush.msra.mxu0 0.0
        %2043 = vmatpush.msra.mxu0 0.0
        %2044 = vmatpush.msra.mxu0 0.0
        %2045 = vmatpush.msra.mxu0 0.0
        %2046 = vmatpush.msra.mxu0 0.0
        %2047 = vmatpush.msra.mxu0 0.0
        %v2048 = vand.u32 %v260, 4294901760
        %2049 = vmatpush.msra.mxu0 %v2048
        %v2050 = vand.u32 %v259, 4294901760
        %2051 = vmatpush.msra.mxu0 %v2050
        %v2052 = vand.u32 %v2029, 4294901760
        %v2053 = vsub.f32 %v2029, %v2052
        %v2054 = vand.u32 %v2053, 4294901760
        %v2055 = vsub.f32 %v2053, %v2054
        %v2056 = vand.u32 %v2055, 4294901760
        %2057 = vmatmul.f32.gmra.mxu0 %v2056
        %v2058 = vpop.f32.mrf.mxu0
        %v2059 = vadd.f32 0.0, %v2058
        %v2060 = vand.u32 %v2032, 4294901760
        %v2061 = vsub.f32 %v2032, %v2060
        %v2062 = vand.u32 %v2061, 4294901760
        %v2063 = vsub.f32 %v2061, %v2062
        %v2064 = vand.u32 %v2063, 4294901760
        %2065 = vmatmul.f32.gmra.mxu0 %v2064
        %v2066 = vpop.f32.mrf.mxu0
        %v2067 = vadd.f32 0.0, %v2066
        %2068 = vdwg.mxu0
        %2069 = vmatpush.msra.mxu0 0.0
        %2070 = vmatpush.msra.mxu0 0.0
        %2071 = vmatpush.msra.mxu0 0.0
        %2072 = vmatpush.msra.mxu0 0.0
        %2073 = vmatpush.msra.mxu0 0.0
        %2074 = vmatpush.msra.mxu0 0.0
        %2075 = vmatpush.msra.mxu0 0.0
        %2076 = vmatpush.msra.mxu0 0.0
        %2077 = vmatpush.msra.mxu0 0.0
        %2078 = vmatpush.msra.mxu0 0.0
        %2079 = vmatpush.msra.mxu0 0.0
        %2080 = vmatpush.msra.mxu0 0.0
        %2081 = vmatpush.msra.mxu0 0.0
        %2082 = vmatpush.msra.mxu0 0.0
        %v2083 = vand.u32 %v260, 4294901760
        %v2084 = vsub.f32 %v260, %v2083
        %v2085 = vand.u32 %v2084, 4294901760
        %v2086 = vsub.f32 %v2084, %v2085
        %v2087 = vand.u32 %v2086, 4294901760
        %2088 = vmatpush.msra.mxu0 %v2087
        %v2089 = vand.u32 %v259, 4294901760
        %v2090 = vsub.f32 %v259, %v2089
        %v2091 = vand.u32 %v2090, 4294901760
        %v2092 = vsub.f32 %v2090, %v2091
        %v2093 = vand.u32 %v2092, 4294901760
        %2094 = vmatpush.msra.mxu0 %v2093
        %v2095 = vand.u32 %v2029, 4294901760
        %2096 = vmatmul.f32.gmra.mxu0 %v2095
        %v2097 = vpop.f32.mrf.mxu0
        %v2098 = vadd.f32 %v2059, %v2097
        %v2099 = vand.u32 %v2032, 4294901760
        %2100 = vmatmul.f32.gmra.mxu0 %v2099
        %v2101 = vpop.f32.mrf.mxu0
        %v2102 = vadd.f32 %v2067, %v2101
        %2103 = vdwg.mxu0
        %2104 = vmatpush.msra.mxu0 0.0
        %2105 = vmatpush.msra.mxu0 0.0
        %2106 = vmatpush.msra.mxu0 0.0
        %2107 = vmatpush.msra.mxu0 0.0
        %2108 = vmatpush.msra.mxu0 0.0
        %2109 = vmatpush.msra.mxu0 0.0
        %2110 = vmatpush.msra.mxu0 0.0
        %2111 = vmatpush.msra.mxu0 0.0
        %2112 = vmatpush.msra.mxu0 0.0
        %2113 = vmatpush.msra.mxu0 0.0
        %2114 = vmatpush.msra.mxu0 0.0
        %2115 = vmatpush.msra.mxu0 0.0
        %2116 = vmatpush.msra.mxu0 0.0
        %2117 = vmatpush.msra.mxu0 0.0
        %v2118 = vand.u32 %v260, 4294901760
        %v2119 = vsub.f32 %v260, %v2118
        %2120 = vmatpush.msra.mxu0 %v2119
        %v2121 = vand.u32 %v259, 4294901760
        %v2122 = vsub.f32 %v259, %v2121
        %2123 = vmatpush.msra.mxu0 %v2122
        %v2124 = vand.u32 %v2029, 4294901760
        %v2125 = vsub.f32 %v2029, %v2124
        %2126 = vmatmul.f32.gmra.mxu0 %v2125
        %v2127 = vpop.f32.mrf.mxu0
        %v2128 = vadd.f32 %v2098, %v2127
        %v2129 = vand.u32 %v2032, 4294901760
        %v2130 = vsub.f32 %v2032, %v2129
        %2131 = vmatmul.f32.gmra.mxu0 %v2130
        %v2132 = vpop.f32.mrf.mxu0
        %v2133 = vadd.f32 %v2102, %v2132
        %2134 = vdwg.mxu0
        %2135 = vmatpush.msra.mxu0 0.0
        %2136 = vmatpush.msra.mxu0 0.0
        %2137 = vmatpush.msra.mxu0 0.0
        %2138 = vmatpush.msra.mxu0 0.0
        %2139 = vmatpush.msra.mxu0 0.0
        %2140 = vmatpush.msra.mxu0 0.0
        %2141 = vmatpush.msra.mxu0 0.0
        %2142 = vmatpush.msra.mxu0 0.0
        %2143 = vmatpush.msra.mxu0 0.0
        %2144 = vmatpush.msra.mxu0 0.0
        %2145 = vmatpush.msra.mxu0 0.0
        %2146 = vmatpush.msra.mxu0 0.0
        %2147 = vmatpush.msra.mxu0 0.0
        %2148 = vmatpush.msra.mxu0 0.0
        %v2149 = vand.u32 %v260, 4294901760
        %2150 = vmatpush.msra.mxu0 %v2149
        %v2151 = vand.u32 %v259, 4294901760
        %2152 = vmatpush.msra.mxu0 %v2151
        %v2153 = vand.u32 %v2029, 4294901760
        %v2154 = vsub.f32 %v2029, %v2153
        %v2155 = vand.u32 %v2154, 4294901760
        %2156 = vmatmul.f32.gmra.mxu0 %v2155
        %v2157 = vpop.f32.mrf.mxu0
        %v2158 = vadd.f32 %v2128, %v2157
        %v2159 = vand.u32 %v2032, 4294901760
        %v2160 = vsub.f32 %v2032, %v2159
        %v2161 = vand.u32 %v2160, 4294901760
        %2162 = vmatmul.f32.gmra.mxu0 %v2161
        %v2163 = vpop.f32.mrf.mxu0
        %v2164 = vadd.f32 %v2133, %v2163
        %2165 = vdwg.mxu0
        %2166 = vmatpush.msra.mxu0 0.0
        %2167 = vmatpush.msra.mxu0 0.0
        %2168 = vmatpush.msra.mxu0 0.0
        %2169 = vmatpush.msra.mxu0 0.0
        %2170 = vmatpush.msra.mxu0 0.0
        %2171 = vmatpush.msra.mxu0 0.0
        %2172 = vmatpush.msra.mxu0 0.0
        %2173 = vmatpush.msra.mxu0 0.0
        %2174 = vmatpush.msra.mxu0 0.0
        %2175 = vmatpush.msra.mxu0 0.0
        %2176 = vmatpush.msra.mxu0 0.0
        %2177 = vmatpush.msra.mxu0 0.0
        %2178 = vmatpush.msra.mxu0 0.0
        %2179 = vmatpush.msra.mxu0 0.0
        %v2180 = vand.u32 %v260, 4294901760
        %v2181 = vsub.f32 %v260, %v2180
        %v2182 = vand.u32 %v2181, 4294901760
        %2183 = vmatpush.msra.mxu0 %v2182
        %v2184 = vand.u32 %v259, 4294901760
        %v2185 = vsub.f32 %v259, %v2184
        %v2186 = vand.u32 %v2185, 4294901760
        %2187 = vmatpush.msra.mxu0 %v2186
        %v2188 = vand.u32 %v2029, 4294901760
        %2189 = vmatmul.f32.gmra.mxu0 %v2188
        %v2190 = vpop.f32.mrf.mxu0
        %v2191 = vadd.f32 %v2158, %v2190
        %v2192 = vand.u32 %v2032, 4294901760
        %2193 = vmatmul.f32.gmra.mxu0 %v2192
        %v2194 = vpop.f32.mrf.mxu0
        %v2195 = vadd.f32 %v2164, %v2194
        %2196 = vdwg.mxu0
        %2197 = vmatpush.msra.mxu0 0.0
        %2198 = vmatpush.msra.mxu0 0.0
        %2199 = vmatpush.msra.mxu0 0.0
        %2200 = vmatpush.msra.mxu0 0.0
        %2201 = vmatpush.msra.mxu0 0.0
        %2202 = vmatpush.msra.mxu0 0.0
        %2203 = vmatpush.msra.mxu0 0.0
        %2204 = vmatpush.msra.mxu0 0.0
        %2205 = vmatpush.msra.mxu0 0.0
        %2206 = vmatpush.msra.mxu0 0.0
        %2207 = vmatpush.msra.mxu0 0.0
        %2208 = vmatpush.msra.mxu0 0.0
        %2209 = vmatpush.msra.mxu0 0.0
        %2210 = vmatpush.msra.mxu0 0.0
        %v2211 = vand.u32 %v260, 4294901760
        %2212 = vmatpush.msra.mxu0 %v2211
        %v2213 = vand.u32 %v259, 4294901760
        %2214 = vmatpush.msra.mxu0 %v2213
        %v2215 = vand.u32 %v2029, 4294901760
        %2216 = vmatmul.f32.gmra.mxu0 %v2215
        %v2217 = vpop.f32.mrf.mxu0
        %v2218 = vadd.f32 %v2191, %v2217
        %v2219 = vand.u32 %v2032, 4294901760
        %2220 = vmatmul.f32.gmra.mxu0 %v2219
        %v2221 = vpop.f32.mrf.mxu0
        %v2222 = vadd.f32 %v2195, %v2221
        %2223 = vdwg.mxu0
        %v2224 = vmul.f32 %v2218, 0.020408163
        %v2225 = vmul.f32 %v2222, 0.020408163
        %v2226 = vmul.f32 %v654, %v1042
        %v2227 = vmul.f32 %v655, %v1043
        %v2228 = vsub.f32 %v2224, %v2226
        %v2229 = vsub.f32 %v2225, %v2227
        %v2230 = vmul.f32 %v2228, 1.0208334
        %v2231 = vmul.f32 %v2229, 1.0208334
        %s2232 = smul.f32 %s228, 0.01
        %s2233 = smul.f32 %s2232, %s2232
        %s2234 = smul.f32 %s228, 0.03
        %s2235 = smul.f32 %s2234, %s2234
        %v2236 = vmul.f32 %v654, 2.0
        %v2237 = vmul.f32 %v655, 2.0
        %v2238 = vmul.f32 %v2236, %v1042
        %v2239 = vmul.f32 %v2237, %v1043
        %v2240 = vstv %s2233
        %v2241 = vadd.f32 %v2238, %v2240
        %v2242 = vadd.f32 %v2239, %v2240
        %v2243 = vmul.f32 %v2230, 2.0
        %v2244 = vmul.f32 %v2231, 2.0
        %v2245 = vstv %s2235
        %v2246 = vadd.f32 %v2243, %v2245
        %v2247 = vadd.f32 %v2244, %v2245
        %v2248 = vadd.f32 %v1434, %v1830
        %v2249 = vadd.f32 %v1435, %v1831
        %v2250 = vadd.f32 %v2248, %v2240
        %v2251 = vadd.f32 %v2249, %v2240
        %v2252 = vadd.f32 %v1438, %v1834
        %v2253 = vadd.f32 %v1439, %v1835
        %v2254 = vadd.f32 %v2252, %v2245
        %v2255 = vadd.f32 %v2253, %v2245
        %v2256 = vmul.f32 %v2241, %v2246
        %v2257 = vmul.f32 %v2242, %v2247
        %v2258 = vmul.f32 %v2250, %v2254
        %v2259 = vmul.f32 %v2251, %v2255
        %v2260 = vrcp.pop %v2258
        %v2261 = vmul.f32 %v2258, %v2260
        %v2262 = vsub.f32 1.0, %v2261
        %v2263 = vmul.f32 %v2260, %v2262
        %v2264 = vadd.f32 %v2260, %v2263
        %vm2265 = vweird.f32 %v2258
        %vm2266 = vweird.f32 %v2260
        %vm2267 = vmor %vm2265, %vm2266
        %v2268 = vsel %vm2267, %v2260, %v2264
        %v2269 = vand.u32 2147483647, %v2258
        %vm2270 = vcmp.eq.f32.partialorder %v2269, 8.507059e+37
        %v2271 = vand.u32 %v2258, 2147483648
        %v2272 = vor.u32 1.1754944e-38, %v2271
        %v2273 = vsel %vm2270, %v2272, %v2268
        %v2274 = vmul.f32 %v2256, %v2273
        %v2275 = vrcp.pop %v2259
        %v2276 = vmul.f32 %v2259, %v2275
        %v2277 = vsub.f32 1.0, %v2276
        %v2278 = vmul.f32 %v2275, %v2277
        %v2279 = vadd.f32 %v2275, %v2278
        %vm2280 = vweird.f32 %v2259
        %vm2281 = vweird.f32 %v2275
        %vm2282 = vmor %vm2280, %vm2281
        %v2283 = vsel %vm2282, %v2275, %v2279
        %v2284 = vand.u32 2147483647, %v2259
        %vm2285 = vcmp.eq.f32.partialorder %v2284, 8.507059e+37
        %v2286 = vand.u32 %v2259, 2147483648
        %v2287 = vor.u32 1.1754944e-38, %v2286
        %v2288 = vsel %vm2285, %v2287, %v2283
        %v2289 = vmul.f32 %v2257, %v2288
        %vm2290 = vcmask 80896
        %v2291 = vsel %vm2290, %v2274, 0.0
        %vm2292 = vcmask 74752
        %v2293 = vsel %vm2292, %v2289, 0.0
        %v2294 = vadd.f32 %v2291, %v2293
        %v2295 = vrot.slane %v2294, 4
        %v2296 = vadd.f32 %v2294, %v2295
        %v2297 = vrot.slane %v2296, 2
        %v2298 = vadd.f32 %v2296, %v2297
        %v2299 = vrot.slane %v2298, 1
        %v2300 = vadd.f32 %v2298, %v2299
        %vm2301 = vcmask 73728
        %2302 = vst.msk [vmem:[%s227] sm:$0x1] %vm2301, %v2300
        %s2303 = sand.u32 %s105, 1
        %s2304 = scalar_lea.sflag [#allocation6], %s2303
        %s2305 = sand.u32 %s105, 1
        %s2306 = scalar_lea.vmem [#allocation9], %s2305
        // Predicated region
        $region37: #{tpu_custom_call.1} parent=27 // pred_check
          %p2307 = pneg %p115
        $region38: #{tpu_custom_call.1} parent=27 // pred_check_branch
          %2309 = sbr.rel (%p2307) target = $region40
        $region39: #{tpu_custom_call.1} parent=27 // pred_region
          %2311 = vsyncadd %s2304, 0
          %s2312 = sadd.s32 %s36, %s35
          %s2313 = scalar_lea.hbm %s3, %s2312
          %s2315 = sshll.u32 %s2306, 4
          %s2316 = int_to_ptr.vmem [resolvable:$true] %s2315
          %s2317 = sshll.u32 %s2313, 4
          %s2318 = int_to_ptr.hbm [resolvable:$true] %s2317
          %2320 = dma.vmem_to_hbm [thread:$0]  %s2316, 16, %s2318, %s2304
        $region40: #{tpu_custom_call.1} parent=27 // pred_fallthru
          _
      $region28: #{tpu_custom_call.1} parent=5 // pred_fallthru
        _
      %p2321 = scmp.le.s32.totalorder 2, %s26
      // Predicated region
      $region41: #{tpu_custom_call.1} parent=5 // pred_check
        %p2322 = pneg %p2321
      $region42: #{tpu_custom_call.1} parent=5 // pred_check_branch
        %2324 = sbr.rel (%p2322) target = $region44
      $region43: #{tpu_custom_call.1} parent=5 // pred_region
        %s2325 = ssub.s32 %s26, 2
        // Predicated region
        $region45: #{tpu_custom_call.1} parent=43 // pred_check
          %p2326 = pneg %p121
        $region46: #{tpu_custom_call.1} parent=43 // pred_check_branch
          %2328 = sbr.rel (%p2326) target = $region48
        $region47: #{tpu_custom_call.1} parent=43 // pred_region
          %s2329 = sand.u32 %s106, 1
          %s2330 = scalar_lea.sflag [#allocation6], %s2329
          %s2331 = sand.u32 %s106, 1
          %s2332 = scalar_lea.vmem [#allocation9], %s2331
          %2334 = dma.done %s2330, 16
        $region48: #{tpu_custom_call.1} parent=43 // pred_fallthru
          _
      $region44: #{tpu_custom_call.1} parent=5 // pred_fallthru
        _
    $region6: #{tpu_custom_call.1} parent=1 // loop_footer
      %s30 = sadd.s32 1, %s26
    $region7: #{tpu_custom_call.1} parent=1 // loop_footer_branch
      %25 = sbr.rel target = $region3
    $region8: #{tpu_custom_call.1} parent=1 // loop_exit
      _
    %2335 = vsyncpa [#allocation5], 1
    %s2336 = scalar_lea.sflag [#allocation5], 1
    %2337 = vsyncpa %s2336, 1
    %2338 = vsyncpa [#allocation8], 1
    %s2339 = scalar_lea.sflag [#allocation8], 1
    %2340 = vsyncpa %s2339, 1
    %2341 = vsyncpa [#allocation6], 1
    %s2342 = scalar_lea.sflag [#allocation6], 1
    %2343 = vsyncpa %s2342, 1

</llo_original>
